<compile_context>
chip_gen: v7x
topology: tpu7x:2x2x1
jax: 0.10.0
libtpu: 0.0.40
codegen_flags: <defaults>
</compile_context>

<pallas_src>
import math
from functools import partial

import jax
import jax.numpy as jnp
from jax.experimental import pallas as pl
from jax.experimental.pallas import tpu as pltpu

NUM_HEADS = 4
EPS = 1e-5
VMEM_LIMIT = 32 * 1024 * 1024  # safe on every generation (v5e scoped default is 16 MiB)


# --------------------------------------------------------------------------- #
# 1) Fused QKV projection + head-major relayout, computed once per sequence.  #
# --------------------------------------------------------------------------- #
def qkv_proj_kernel(x_ref, wqkv_ref, bqkv_ref, qh_ref, kh_ref, vh_ref):
    TR, D = x_ref.shape
    H, hd = qh_ref.shape[0], qh_ref.shape[2]
    scale = 1.0 / math.sqrt(hd)

    # One MXU pass with N = 3D (bf16 operands, f32 accumulation), f32 bias add.
    qkv = jnp.dot(x_ref[...].astype(jnp.bfloat16), wqkv_ref[...],
                  preferred_element_type=jnp.float32) + bqkv_ref[...]     # (TR, 3D)

    q = qkv[:, :D] * scale            # fold the 1/sqrt(hd) scale into Q here
    k = qkv[:, D:2 * D]
    v = qkv[:, 2 * D:]

    # Head-major relayout, hoisted out of the attention kernel's query loop.
    qh_ref[...] = q.reshape(TR, H, hd).transpose(1, 0, 2)
    kh_ref[...] = k.reshape(TR, H, hd).transpose(1, 0, 2)
    vh_ref[...] = v.reshape(TR, H, hd).transpose(1, 0, 2)


# --------------------------------------------------------------------------- #
# 2a) Attention with materialized weights (module's return signature).        #
#     Grid over query blocks ("parallel"); K/V kept whole per block because   #
#     exact, fully-normalized (H, S, S) weights must be written back.         #
# --------------------------------------------------------------------------- #
def attn_kernel(qh_ref, kh_ref, vh_ref, xres_ref, wo_ref, bo_ref,
                gamma_ref, beta_ref, out_ref, attn_ref):
    qh = qh_ref[...].astype(jnp.bfloat16)                  # (H, TQ, hd)
    kh = kh_ref[...].astype(jnp.bfloat16)                  # (H, S,  hd)
    vh = vh_ref[...].astype(jnp.bfloat16)                  # (H, S,  hd)

    # Batched QK^T (batch = head, contraction = head_dim); Q was pre-scaled.
    scores = jnp.einsum("hqd,hkd->hqk", qh, kh,
                        preferred_element_type=jnp.float32)     # (H, TQ, S) f32

    # Numerically stable softmax; exact normalization so stored rows sum to 1.
    m = jnp.max(scores, axis=-1, keepdims=True)
    p = jnp.exp(scores - m)
    w = p / jnp.sum(p, axis=-1, keepdims=True)
    attn_ref[...] = w

    # Batched PV.
    ctx = jnp.einsum("hqk,hkd->hqd", w.astype(jnp.bfloat16), vh,
                     preferred_element_type=jnp.float32)        # (H, TQ, hd)

    # Output projection contracting head & head_dim directly (no ctx transpose
    # or reshape): per-head batched matmul + sum over heads.
    proj = jnp.einsum("hqd,hdn->hqn", ctx.astype(jnp.bfloat16), wo_ref[...],
                      preferred_element_type=jnp.float32).sum(axis=0)
    y = proj + bo_ref[...] + xres_ref[...]

    mu = jnp.mean(y, axis=-1, keepdims=True)
    var = jnp.mean((y - mu) ** 2, axis=-1, keepdims=True)
    out_ref[...] = ((y - mu) * jax.lax.rsqrt(var + EPS)) * gamma_ref[...] + beta_ref[...]


# --------------------------------------------------------------------------- #
# 2b) Flash-style attention (no weights output): K/V tiled along an inner     #
#     "arbitrary" axis, online softmax with m/l/acc scratch, VMEM bounded by  #
#     O(TQ*TK) slabs.  Finalize (proj + residual + LayerNorm) on last KV step.#
# --------------------------------------------------------------------------- #
def flash_attn_kernel(qh_ref, kh_ref, vh_ref, xres_ref, wo_ref, bo_ref,
                      gamma_ref, beta_ref, out_ref, m_sc, l_sc, acc_sc):
    ki = pl.program_id(1)

    @pl.when(ki == 0)
    def _():
        m_sc[...] = jnp.full_like(m_sc[...], -jnp.inf)
        l_sc[...] = jnp.zeros_like(l_sc[...])
        acc_sc[...] = jnp.zeros_like(acc_sc[...])

    qh = qh_ref[...].astype(jnp.bfloat16)                  # (H, TQ, hd)
    kh = kh_ref[...].astype(jnp.bfloat16)                  # (H, TK, hd)
    vh = vh_ref[...].astype(jnp.bfloat16)

    s = jnp.einsum("hqd,hkd->hqk", qh, kh,
                   preferred_element_type=jnp.float32)     # (H, TQ, TK) f32
    m_new = jnp.maximum(m_sc[...], jnp.max(s, axis=-1, keepdims=True))
    alpha = jnp.exp(m_sc[...] - m_new)
    p = jnp.exp(s - m_new)
    l_sc[...] = alpha * l_sc[...] + jnp.sum(p, axis=-1, keepdims=True)
    acc_sc[...] = alpha * acc_sc[...] + jnp.einsum(
        "hqk,hkd->hqd", p.astype(jnp.bfloat16), vh,
        preferred_element_type=jnp.float32)
    m_sc[...] = m_new

    @pl.when(ki == pl.num_programs(1) - 1)
    def _():
        # Approx EUP reciprocal is fine here: context-path only, no stored w.
        ctx = acc_sc[...] * pl.reciprocal(l_sc[...], approx=True)   # (H, TQ, hd)
        proj = jnp.einsum("hqd,hdn->hqn", ctx.astype(jnp.bfloat16), wo_ref[...],
                          preferred_element_type=jnp.float32).sum(axis=0)
        y = proj + bo_ref[...] + xres_ref[...]
        mu = jnp.mean(y, axis=-1, keepdims=True)
        var = jnp.mean((y - mu) ** 2, axis=-1, keepdims=True)
        out_ref[...] = ((y - mu) * jax.lax.rsqrt(var + EPS)) * gamma_ref[...] + beta_ref[...]


# --------------------------------------------------------------------------- #
# Wrapper                                                                      #
# --------------------------------------------------------------------------- #
@partial(jax.jit, static_argnames=("return_attn",))
def multi_head_attention(x, params, return_attn=True):
    S, D = x.shape
    H = NUM_HEADS
    hd = D // H
    assert hd * H == D, "input_size must be divisible by num_heads"

    # ---- QKV projection, row-tiled, run once ahead of the attention grid. ----
    TR = S if S <= 256 else 256
    assert S % TR == 0, "seq_len must be a multiple of the projection row tile"
    w_qkv = jnp.concatenate(
        [params["wq"], params["wk"], params["wv"]], axis=1).astype(jnp.bfloat16)
    b_qkv = jnp.concatenate([params["bq"], params["bk"], params["bv"]], axis=1)

    head_major = jax.ShapeDtypeStruct((H, S, hd), jnp.float32)
    qh, kh, vh = pl.pallas_call(
        qkv_proj_kernel,
        grid=(S // TR,),
        in_specs=[
            pl.BlockSpec((TR, D), lambda r: (r, 0)),          # x row block
            pl.BlockSpec((D, 3 * D), lambda r: (0, 0)),       # fused W_qkv (bf16)
            pl.BlockSpec((1, 3 * D), lambda r: (0, 0)),       # fused b_qkv (f32)
        ],
        out_specs=(
            pl.BlockSpec((H, TR, hd), lambda r: (0, r, 0)),
            pl.BlockSpec((H, TR, hd), lambda r: (0, r, 0)),
            pl.BlockSpec((H, TR, hd), lambda r: (0, r, 0)),
        ),
        out_shape=(head_major, head_major, head_major),
        compiler_params=pltpu.CompilerParams(
            dimension_semantics=("parallel",),
            vmem_limit_bytes=VMEM_LIMIT),
    )(x, w_qkv, b_qkv)

    # W_out reshaped once in the wrapper so the kernel contracts (head, hd)
    # without transposing ctx.
    wo_r = params["wo"].reshape(H, hd, D).astype(jnp.bfloat16)
    bo, gamma, beta = params["bo"], params["gamma"], params["beta"]

    TQ = S if S <= 128 else 128
    assert S % TQ == 0, "seq_len must be a multiple of the query tile"
    num_q_blocks = S // TQ

    if return_attn:
        out, attn = pl.pallas_call(
            attn_kernel,
            grid=(num_q_blocks,),
            in_specs=[
                pl.BlockSpec((H, TQ, hd), lambda i: (0, i, 0)),   # Q (this block)
                pl.BlockSpec((H, S, hd), lambda i: (0, 0, 0)),    # K (full)
                pl.BlockSpec((H, S, hd), lambda i: (0, 0, 0)),    # V (full)
                pl.BlockSpec((TQ, D), lambda i: (i, 0)),          # residual rows
                pl.BlockSpec((H, hd, D), lambda i: (0, 0, 0)),    # W_out head-major
                pl.BlockSpec((1, D), lambda i: (0, 0)),           # b_out
                pl.BlockSpec((1, D), lambda i: (0, 0)),           # gamma
                pl.BlockSpec((1, D), lambda i: (0, 0)),           # beta
            ],
            out_specs=(
                pl.BlockSpec((TQ, D), lambda i: (i, 0)),
                pl.BlockSpec((H, TQ, S), lambda i: (0, i, 0)),
            ),
            out_shape=(
                jax.ShapeDtypeStruct((S, D), jnp.float32),        # output
                jax.ShapeDtypeStruct((H, S, S), jnp.float32),     # attn_weights
            ),
            compiler_params=pltpu.CompilerParams(
                dimension_semantics=("parallel",),
                vmem_limit_bytes=VMEM_LIMIT),
        )(qh, kh, vh, x, wo_r, bo, gamma, beta)
        return out, attn

    # Flash path: no (H, S, S) writeback, KV axis "arbitrary", query axis stays
    # "parallel" for v7x megacore sharding.
    TK = S if S <= 128 else 128
    assert S % TK == 0, "seq_len must be a multiple of the KV tile"
    num_kv_blocks = S // TK
    out = pl.pallas_call(
        flash_attn_kernel,
        grid=(num_q_blocks, num_kv_blocks),
        in_specs=[
            pl.BlockSpec((H, TQ, hd), lambda i, j: (0, i, 0)),
            pl.BlockSpec((H, TK, hd), lambda i, j: (0, j, 0)),
            pl.BlockSpec((H, TK, hd), lambda i, j: (0, j, 0)),
            pl.BlockSpec((TQ, D), lambda i, j: (i, 0)),
            pl.BlockSpec((H, hd, D), lambda i, j: (0, 0, 0)),
            pl.BlockSpec((1, D), lambda i, j: (0, 0)),
            pl.BlockSpec((1, D), lambda i, j: (0, 0)),
            pl.BlockSpec((1, D), lambda i, j: (0, 0)),
        ],
        out_specs=pl.BlockSpec((TQ, D), lambda i, j: (i, 0)),
        out_shape=jax.ShapeDtypeStruct((S, D), jnp.float32),
        scratch_shapes=[
            pltpu.VMEM((H, TQ, 1), jnp.float32),     # running max m
            pltpu.VMEM((H, TQ, 1), jnp.float32),     # running denom l
            pltpu.VMEM((H, TQ, hd), jnp.float32),    # running context acc
        ],
        compiler_params=pltpu.CompilerParams(
            dimension_semantics=("parallel", "arbitrary"),
            vmem_limit_bytes=VMEM_LIMIT),
    )(qh, kh, vh, x, wo_r, bo, gamma, beta)
    return out


# --------------------------------------------------------------------------- #
# Params / reference                                                           #
# --------------------------------------------------------------------------- #
def init_params(key, input_size):
    ks = jax.random.split(key, 8)
    bound = 1.0 / math.sqrt(input_size)

    def lin(kw, kb):
        # nn.Linear default init: U(-1/sqrt(fan_in), 1/sqrt(fan_in))
        w = jax.random.uniform(kw, (input_size, input_size), jnp.float32, -bound, bound)
        b = jax.random.uniform(kb, (1, input_size), jnp.float32, -bound, bound)
        return w, b

    wq, bq = lin(ks[0], ks[1])
    wk, bk = lin(ks[2], ks[3])
    wv, bv = lin(ks[4], ks[5])
    wo, bo = lin(ks[6], ks[7])
    return dict(
        wq=wq, bq=bq, wk=wk, bk=bk, wv=wv, bv=bv, wo=wo, bo=bo,
        gamma=jnp.ones((1, input_size), jnp.float32),
        beta=jnp.zeros((1, input_size), jnp.float32),
    )


def reference(x, params):
    S, D = x.shape
    H = NUM_HEADS
    hd = D // H
    q = (x @ params["wq"] + params["bq"]).reshape(S, H, hd).transpose(1, 0, 2)
    k = (x @ params["wk"] + params["bk"]).reshape(S, H, hd).transpose(1, 0, 2)
    v = (x @ params["wv"] + params["bv"]).reshape(S, H, hd).transpose(1, 0, 2)
    scores = jnp.einsum("hqd,hkd->hqk", q, k) / math.sqrt(hd)
    w = jax.nn.softmax(scores, axis=-1)
    ao = jnp.einsum("hqk,hkd->hqd", w, v).transpose(1, 0, 2).reshape(S, D)
    y = ao @ params["wo"] + params["bo"] + x
    mu = y.mean(-1, keepdims=True)
    var = ((y - mu) ** 2).mean(-1, keepdims=True)
    return (y - mu) / jnp.sqrt(var + EPS) * params["gamma"] + params["beta"], w


if __name__ == "__main__":
    seq_len = 8
    input_size = 32

    key = jax.random.PRNGKey(0)
    kx, kp = jax.random.split(key)
    x = jax.random.normal(kx, (seq_len, input_size), jnp.float32)
    params = init_params(kp, input_size)

    # Module-faithful path (returns output + attention weights).
    out, attn = multi_head_attention(x, params, return_attn=True)
    # Flash path (output only, bounded-VMEM KV tiling).
    out_flash = multi_head_attention(x, params, return_attn=False)
    out, attn, out_flash = jax.block_until_ready((out, attn, out_flash))

    ref_out, ref_attn = reference(x, params)
    # bf16 MXU operands (f32 accumulation) vs the f32 reference -> 2e-3 tolerance.
    assert jnp.allclose(out, ref_out, atol=2e-3, rtol=2e-3), "output mismatch"
    assert jnp.allclose(attn, ref_attn, atol=2e-3, rtol=2e-3), "attn mismatch"
    assert jnp.allclose(out_flash, ref_out, atol=2e-3, rtol=2e-3), "flash output mismatch"

    print("KERNEL_OK")
</pallas_src>

<mosaic_0001>
module attributes {stable_mosaic.version = 11 : i64} {
  func.func @qkv_proj_kernel(%arg0: i32, %arg1: memref<8x32xf32, #tpu.memory_space<vmem>>, %arg2: memref<32x96xbf16, #tpu.memory_space<vmem>>, %arg3: memref<1x96xf32, #tpu.memory_space<vmem>>, %arg4: memref<4x8x8xf32, #tpu.memory_space<vmem>>, %arg5: memref<4x8x8xf32, #tpu.memory_space<vmem>>, %arg6: memref<4x8x8xf32, #tpu.memory_space<vmem>>) attributes {dimension_semantics = [#tpu.dimension_semantics<parallel>], iteration_bounds = array<i64: 1>, scalar_prefetch = 0 : i64, scratch_operands = 0 : i64, tpu.core_type = #tpu.core_type<tc>, window_params = [{transform_indices = @transform_0, window_bounds = array<i64: 8, 32>}, {pipeline_mode = #tpu.pipeline_mode<synchronous>, transform_indices = @transform_1, window_bounds = array<i64: 32, 96>}, {pipeline_mode = #tpu.pipeline_mode<synchronous>, transform_indices = @transform_2, window_bounds = array<i64: 1, 96>}, {transform_indices = @transform_3, window_bounds = array<i64: 4, 8, 8>}, {transform_indices = @transform_4, window_bounds = array<i64: 4, 8, 8>}, {transform_indices = @transform_5, window_bounds = array<i64: 4, 8, 8>}]} {
    %c0 = arith.constant 0 : index
    %c0_0 = arith.constant 0 : index
    %0 = vector.load %arg1[%c0, %c0_0] : memref<8x32xf32, #tpu.memory_space<vmem>>, vector<8x32xf32>
    %1 = arith.truncf %0 : vector<8x32xf32> to vector<8x32xbf16>
    %c0_1 = arith.constant 0 : index
    %c0_2 = arith.constant 0 : index
    %2 = vector.load %arg2[%c0_1, %c0_2] : memref<32x96xbf16, #tpu.memory_space<vmem>>, vector<32x96xbf16>
    %cst = arith.constant dense<0.000000e+00> : vector<8x96xf32>
    %3 = tpu.matmul %1, %2, %cst {dimension_numbers = #tpu.dot_dimension_numbers<[1], [0], [0], [1], [0, 0, 1, 1], [], []>} : vector<8x32xbf16>, vector<32x96xbf16>, vector<8x96xf32> -> vector<8x96xf32>
    %c0_3 = arith.constant 0 : index
    %c0_4 = arith.constant 0 : index
    %4 = vector.load %arg3[%c0_3, %c0_4] : memref<1x96xf32, #tpu.memory_space<vmem>>, vector<1x96xf32>
    %5 = vector.broadcast %4 : vector<1x96xf32> to vector<8x96xf32>
    %6 = arith.addf %3, %5 : vector<8x96xf32>
    %7 = vector.extract_strided_slice %6 {offsets = [0, 0], sizes = [8, 32], strides = [1, 1]} : vector<8x96xf32> to vector<8x32xf32>
    %cst_5 = arith.constant 0.353553385 : f32
    %8 = vector.broadcast %cst_5 : f32 to vector<8x32xf32>
    %9 = arith.mulf %7, %8 : vector<8x32xf32>
    %10 = vector.extract_strided_slice %6 {offsets = [0, 32], sizes = [8, 32], strides = [1, 1]} : vector<8x96xf32> to vector<8x32xf32>
    %11 = vector.extract_strided_slice %6 {offsets = [0, 64], sizes = [8, 32], strides = [1, 1]} : vector<8x96xf32> to vector<8x32xf32>
    %12 = vector.shape_cast %9 : vector<8x32xf32> to vector<8x4x8xf32>
    %13 = tpu.transpose %12, [1, 0, 2] : vector<8x4x8xf32> -> vector<4x8x8xf32>
    %c0_6 = arith.constant 0 : index
    %c0_7 = arith.constant 0 : index
    %c0_8 = arith.constant 0 : index
    %14 = vector.load %arg4[%c0_6, %c0_7, %c0_8] : memref<4x8x8xf32, #tpu.memory_space<vmem>>, vector<4x8x8xf32>
    tpu.vector_store %arg4[%c0_6, %c0_7, %c0_8], %13 {strides = array<i32>} : memref<4x8x8xf32, #tpu.memory_space<vmem>>, vector<4x8x8xf32>,
    %15 = vector.shape_cast %10 : vector<8x32xf32> to vector<8x4x8xf32>
    %16 = tpu.transpose %15, [1, 0, 2] : vector<8x4x8xf32> -> vector<4x8x8xf32>
    %c0_9 = arith.constant 0 : index
    %c0_10 = arith.constant 0 : index
    %c0_11 = arith.constant 0 : index
    %17 = vector.load %arg5[%c0_9, %c0_10, %c0_11] : memref<4x8x8xf32, #tpu.memory_space<vmem>>, vector<4x8x8xf32>
    tpu.vector_store %arg5[%c0_9, %c0_10, %c0_11], %16 {strides = array<i32>} : memref<4x8x8xf32, #tpu.memory_space<vmem>>, vector<4x8x8xf32>,
    %18 = vector.shape_cast %11 : vector<8x32xf32> to vector<8x4x8xf32>
    %19 = tpu.transpose %18, [1, 0, 2] : vector<8x4x8xf32> -> vector<4x8x8xf32>
    %c0_12 = arith.constant 0 : index
    %c0_13 = arith.constant 0 : index
    %c0_14 = arith.constant 0 : index
    %20 = vector.load %arg6[%c0_12, %c0_13, %c0_14] : memref<4x8x8xf32, #tpu.memory_space<vmem>>, vector<4x8x8xf32>
    tpu.vector_store %arg6[%c0_12, %c0_13, %c0_14], %19 {strides = array<i32>} : memref<4x8x8xf32, #tpu.memory_space<vmem>>, vector<4x8x8xf32>,
    return
  }
  func.func @transform_0(%arg0: i32) -> (i32, i32) {
    %c0_i32 = arith.constant 0 : i32
    %c0_i32_0 = arith.constant 0 : i32
    return %arg0, %c0_i32 : i32, i32
  }
  func.func @transform_1(%arg0: i32) -> (i32, i32) {
    %c0_i32 = arith.constant 0 : i32
    %c0_i32_0 = arith.constant 0 : i32
    %c0_i32_1 = arith.constant 0 : i32
    return %c0_i32, %c0_i32_0 : i32, i32
  }
  func.func @transform_2(%arg0: i32) -> (i32, i32) {
    %c0_i32 = arith.constant 0 : i32
    %c0_i32_0 = arith.constant 0 : i32
    %c0_i32_1 = arith.constant 0 : i32
    return %c0_i32, %c0_i32_0 : i32, i32
  }
  func.func @transform_3(%arg0: i32) -> (i32, i32, i32) {
    %c0_i32 = arith.constant 0 : i32
    %c0_i32_0 = arith.constant 0 : i32
    %c0_i32_1 = arith.constant 0 : i32
    return %c0_i32, %arg0, %c0_i32_0 : i32, i32, i32
  }
  func.func @transform_4(%arg0: i32) -> (i32, i32, i32) {
    %c0_i32 = arith.constant 0 : i32
    %c0_i32_0 = arith.constant 0 : i32
    %c0_i32_1 = arith.constant 0 : i32
    return %c0_i32, %arg0, %c0_i32_0 : i32, i32, i32
  }
  func.func @transform_5(%arg0: i32) -> (i32, i32, i32) {
    %c0_i32 = arith.constant 0 : i32
    %c0_i32_0 = arith.constant 0 : i32
    %c0_i32_1 = arith.constant 0 : i32
    return %c0_i32, %arg0, %c0_i32_0 : i32, i32, i32
  }
}

module attributes {stable_mosaic.version = 11 : i64} {
  func.func @attn_kernel(%arg0: i32, %arg1: memref<4x8x8xf32, #tpu.memory_space<vmem>>, %arg2: memref<4x8x8xf32, #tpu.memory_space<vmem>>, %arg3: memref<4x8x8xf32, #tpu.memory_space<vmem>>, %arg4: memref<8x32xf32, #tpu.memory_space<vmem>>, %arg5: memref<4x8x32xbf16, #tpu.memory_space<vmem>>, %arg6: memref<1x32xf32, #tpu.memory_space<vmem>>, %arg7: memref<1x32xf32, #tpu.memory_space<vmem>>, %arg8: memref<1x32xf32, #tpu.memory_space<vmem>>, %arg9: memref<8x32xf32, #tpu.memory_space<vmem>>, %arg10: memref<4x8x8xf32, #tpu.memory_space<vmem>>) attributes {dimension_semantics = [#tpu.dimension_semantics<parallel>], iteration_bounds = array<i64: 1>, scalar_prefetch = 0 : i64, scratch_operands = 0 : i64, tpu.core_type = #tpu.core_type<tc>, window_params = [{transform_indices = @transform_0, window_bounds = array<i64: 4, 8, 8>}, {pipeline_mode = #tpu.pipeline_mode<synchronous>, transform_indices = @transform_1, window_bounds = array<i64: 4, 8, 8>}, {pipeline_mode = #tpu.pipeline_mode<synchronous>, transform_indices = @transform_2, window_bounds = array<i64: 4, 8, 8>}, {transform_indices = @transform_3, window_bounds = array<i64: 8, 32>}, {pipeline_mode = #tpu.pipeline_mode<synchronous>, transform_indices = @transform_4, window_bounds = array<i64: 4, 8, 32>}, {pipeline_mode = #tpu.pipeline_mode<synchronous>, transform_indices = @transform_5, window_bounds = array<i64: 1, 32>}, {pipeline_mode = #tpu.pipeline_mode<synchronous>, transform_indices = @transform_6, window_bounds = array<i64: 1, 32>}, {pipeline_mode = #tpu.pipeline_mode<synchronous>, transform_indices = @transform_7, window_bounds = array<i64: 1, 32>}, {transform_indices = @transform_8, window_bounds = array<i64: 8, 32>}, {transform_indices = @transform_9, window_bounds = array<i64: 4, 8, 8>}]} {
    %c0 = arith.constant 0 : index
    %c0_0 = arith.constant 0 : index
    %c0_1 = arith.constant 0 : index
    %0 = vector.load %arg1[%c0, %c0_0, %c0_1] : memref<4x8x8xf32, #tpu.memory_space<vmem>>, vector<4x8x8xf32>
    %1 = arith.truncf %0 : vector<4x8x8xf32> to vector<4x8x8xbf16>
    %c0_2 = arith.constant 0 : index
    %c0_3 = arith.constant 0 : index
    %c0_4 = arith.constant 0 : index
    %2 = vector.load %arg2[%c0_2, %c0_3, %c0_4] : memref<4x8x8xf32, #tpu.memory_space<vmem>>, vector<4x8x8xf32>
    %3 = arith.truncf %2 : vector<4x8x8xf32> to vector<4x8x8xbf16>
    %c0_5 = arith.constant 0 : index
    %c0_6 = arith.constant 0 : index
    %c0_7 = arith.constant 0 : index
    %4 = vector.load %arg3[%c0_5, %c0_6, %c0_7] : memref<4x8x8xf32, #tpu.memory_space<vmem>>, vector<4x8x8xf32>
    %5 = arith.truncf %4 : vector<4x8x8xf32> to vector<4x8x8xbf16>
    "tpu.trace_start"() <{level = 10 : i32, message = "hqd,hkd->hqk"}> : () -> ()
    %cst = arith.constant dense<0.000000e+00> : vector<4x8x8xf32>
    %6 = tpu.matmul %1, %3, %cst {dimension_numbers = #tpu.dot_dimension_numbers<[2], [2], [1], [1], [0, 0, 0, 1, 1, 1], [0], [0]>} : vector<4x8x8xbf16>, vector<4x8x8xbf16>, vector<4x8x8xf32> -> vector<4x8x8xf32>
    "tpu.trace_stop"() : () -> ()
    %cst_8 = arith.constant dense<0xFF800000> : vector<4x8xf32>
    %7 = vector.multi_reduction <maximumf>, %6, %cst_8 [2] : vector<4x8x8xf32> to vector<4x8xf32>
    %8 = vector.shape_cast %7 : vector<4x8xf32> to vector<4x8x1xf32>
    %9 = vector.broadcast %8 : vector<4x8x1xf32> to vector<4x8x8xf32>
    %10 = arith.subf %6, %9 : vector<4x8x8xf32>
    %11 = math.exp %10 : vector<4x8x8xf32>
    %cst_9 = arith.constant dense<0.000000e+00> : vector<4x8xf32>
    %12 = vector.multi_reduction <add>, %11, %cst_9 [2] : vector<4x8x8xf32> to vector<4x8xf32>
    %13 = vector.shape_cast %12 : vector<4x8xf32> to vector<4x8x1xf32>
    %14 = vector.broadcast %13 : vector<4x8x1xf32> to vector<4x8x8xf32>
    %15 = arith.divf %11, %14 : vector<4x8x8xf32>
    %c0_10 = arith.constant 0 : index
    %c0_11 = arith.constant 0 : index
    %c0_12 = arith.constant 0 : index
    %16 = vector.load %arg10[%c0_10, %c0_11, %c0_12] : memref<4x8x8xf32, #tpu.memory_space<vmem>>, vector<4x8x8xf32>
    tpu.vector_store %arg10[%c0_10, %c0_11, %c0_12], %15 {strides = array<i32>} : memref<4x8x8xf32, #tpu.memory_space<vmem>>, vector<4x8x8xf32>,
    %17 = arith.truncf %15 : vector<4x8x8xf32> to vector<4x8x8xbf16>
    "tpu.trace_start"() <{level = 10 : i32, message = "hqk,hkd->hqd"}> : () -> ()
    %cst_13 = arith.constant dense<0.000000e+00> : vector<4x8x8xf32>
    %18 = tpu.matmul %17, %5, %cst_13 {dimension_numbers = #tpu.dot_dimension_numbers<[2], [1], [1], [2], [0, 0, 0, 1, 1, 2], [0], [0]>} : vector<4x8x8xbf16>, vector<4x8x8xbf16>, vector<4x8x8xf32> -> vector<4x8x8xf32>
    "tpu.trace_stop"() : () -> ()
    %19 = arith.truncf %18 : vector<4x8x8xf32> to vector<4x8x8xbf16>
    %c0_14 = arith.constant 0 : index
    %c0_15 = arith.constant 0 : index
    %c0_16 = arith.constant 0 : index
    %20 = vector.load %arg5[%c0_14, %c0_15, %c0_16] : memref<4x8x32xbf16, #tpu.memory_space<vmem>>, vector<4x8x32xbf16>
    "tpu.trace_start"() <{level = 10 : i32, message = "hqd,hdn->hqn"}> : () -> ()
    %cst_17 = arith.constant dense<0.000000e+00> : vector<4x8x32xf32>
    %21 = tpu.matmul %19, %20, %cst_17 {dimension_numbers = #tpu.dot_dimension_numbers<[2], [1], [1], [2], [0, 0, 0, 1, 1, 2], [0], [0]>} : vector<4x8x8xbf16>, vector<4x8x32xbf16>, vector<4x8x32xf32> -> vector<4x8x32xf32>
    "tpu.trace_stop"() : () -> ()
    %cst_18 = arith.constant dense<0.000000e+00> : vector<8x32xf32>
    %22 = vector.multi_reduction <add>, %21, %cst_18 [0] : vector<4x8x32xf32> to vector<8x32xf32>
    %c0_19 = arith.constant 0 : index
    %c0_20 = arith.constant 0 : index
    %23 = vector.load %arg6[%c0_19, %c0_20] : memref<1x32xf32, #tpu.memory_space<vmem>>, vector<1x32xf32>
    %24 = vector.broadcast %23 : vector<1x32xf32> to vector<8x32xf32>
    %25 = arith.addf %22, %24 : vector<8x32xf32>
    %c0_21 = arith.constant 0 : index
    %c0_22 = arith.constant 0 : index
    %26 = vector.load %arg4[%c0_21, %c0_22] : memref<8x32xf32, #tpu.memory_space<vmem>>, vector<8x32xf32>
    %27 = arith.addf %25, %26 : vector<8x32xf32>
    %cst_23 = arith.constant dense<0.000000e+00> : vector<8xf32>
    %28 = vector.multi_reduction <add>, %27, %cst_23 [1] : vector<8x32xf32> to vector<8xf32>
    %29 = vector.shape_cast %28 : vector<8xf32> to vector<8x1xf32>
    %cst_24 = arith.constant 3.200000e+01 : f32
    %30 = vector.broadcast %cst_24 : f32 to vector<8x1xf32>
    %31 = arith.divf %29, %30 : vector<8x1xf32>
    %32 = vector.broadcast %31 : vector<8x1xf32> to vector<8x32xf32>
    %33 = arith.subf %27, %32 : vector<8x32xf32>
    %34 = arith.mulf %33, %33 : vector<8x32xf32>
    %cst_25 = arith.constant dense<0.000000e+00> : vector<8xf32>
    %35 = vector.multi_reduction <add>, %34, %cst_25 [1] : vector<8x32xf32> to vector<8xf32>
    %36 = vector.shape_cast %35 : vector<8xf32> to vector<8x1xf32>
    %cst_26 = arith.constant 3.200000e+01 : f32
    %37 = vector.broadcast %cst_26 : f32 to vector<8x1xf32>
    %38 = arith.divf %36, %37 : vector<8x1xf32>
    %39 = vector.broadcast %31 : vector<8x1xf32> to vector<8x32xf32>
    %40 = arith.subf %27, %39 : vector<8x32xf32>
    %cst_27 = arith.constant 9.99999974E-6 : f32
    %41 = vector.broadcast %cst_27 : f32 to vector<8x1xf32>
    %42 = arith.addf %38, %41 : vector<8x1xf32>
    %43 = math.rsqrt %42 : vector<8x1xf32>
    %44 = vector.broadcast %43 : vector<8x1xf32> to vector<8x32xf32>
    %45 = arith.mulf %40, %44 : vector<8x32xf32>
    %c0_28 = arith.constant 0 : index
    %c0_29 = arith.constant 0 : index
    %46 = vector.load %arg7[%c0_28, %c0_29] : memref<1x32xf32, #tpu.memory_space<vmem>>, vector<1x32xf32>
    %47 = vector.broadcast %46 : vector<1x32xf32> to vector<8x32xf32>
    %48 = arith.mulf %45, %47 : vector<8x32xf32>
    %c0_30 = arith.constant 0 : index
    %c0_31 = arith.constant 0 : index
    %49 = vector.load %arg8[%c0_30, %c0_31] : memref<1x32xf32, #tpu.memory_space<vmem>>, vector<1x32xf32>
    %50 = vector.broadcast %49 : vector<1x32xf32> to vector<8x32xf32>
    %51 = arith.addf %48, %50 : vector<8x32xf32>
    %c0_32 = arith.constant 0 : index
    %c0_33 = arith.constant 0 : index
    %52 = vector.load %arg9[%c0_32, %c0_33] : memref<8x32xf32, #tpu.memory_space<vmem>>, vector<8x32xf32>
    tpu.vector_store %arg9[%c0_32, %c0_33], %51 {strides = array<i32>} : memref<8x32xf32, #tpu.memory_space<vmem>>, vector<8x32xf32>,
    return
  }
  func.func @transform_0(%arg0: i32) -> (i32, i32, i32) {
    %c0_i32 = arith.constant 0 : i32
    %c0_i32_0 = arith.constant 0 : i32
    %c0_i32_1 = arith.constant 0 : i32
    return %c0_i32, %arg0, %c0_i32_0 : i32, i32, i32
  }
  func.func @transform_1(%arg0: i32) -> (i32, i32, i32) {
    %c0_i32 = arith.constant 0 : i32
    %c0_i32_0 = arith.constant 0 : i32
    %c0_i32_1 = arith.constant 0 : i32
    %c0_i32_2 = arith.constant 0 : i32
    return %c0_i32, %c0_i32_0, %c0_i32_1 : i32, i32, i32
  }
  func.func @transform_2(%arg0: i32) -> (i32, i32, i32) {
    %c0_i32 = arith.constant 0 : i32
    %c0_i32_0 = arith.constant 0 : i32
    %c0_i32_1 = arith.constant 0 : i32
    %c0_i32_2 = arith.constant 0 : i32
    return %c0_i32, %c0_i32_0, %c0_i32_1 : i32, i32, i32
  }
  func.func @transform_3(%arg0: i32) -> (i32, i32) {
    %c0_i32 = arith.constant 0 : i32
    %c0_i32_0 = arith.constant 0 : i32
    return %arg0, %c0_i32 : i32, i32
  }
  func.func @transform_4(%arg0: i32) -> (i32, i32, i32) {
    %c0_i32 = arith.constant 0 : i32
    %c0_i32_0 = arith.constant 0 : i32
    %c0_i32_1 = arith.constant 0 : i32
    %c0_i32_2 = arith.constant 0 : i32
    return %c0_i32, %c0_i32_0, %c0_i32_1 : i32, i32, i32
  }
  func.func @transform_5(%arg0: i32) -> (i32, i32) {
    %c0_i32 = arith.constant 0 : i32
    %c0_i32_0 = arith.constant 0 : i32
    %c0_i32_1 = arith.constant 0 : i32
    return %c0_i32, %c0_i32_0 : i32, i32
  }
  func.func @transform_6(%arg0: i32) -> (i32, i32) {
    %c0_i32 = arith.constant 0 : i32
    %c0_i32_0 = arith.constant 0 : i32
    %c0_i32_1 = arith.constant 0 : i32
    return %c0_i32, %c0_i32_0 : i32, i32
  }
  func.func @transform_7(%arg0: i32) -> (i32, i32) {
    %c0_i32 = arith.constant 0 : i32
    %c0_i32_0 = arith.constant 0 : i32
    %c0_i32_1 = arith.constant 0 : i32
    return %c0_i32, %c0_i32_0 : i32, i32
  }
  func.func @transform_8(%arg0: i32) -> (i32, i32) {
    %c0_i32 = arith.constant 0 : i32
    %c0_i32_0 = arith.constant 0 : i32
    return %arg0, %c0_i32 : i32, i32
  }
  func.func @transform_9(%arg0: i32) -> (i32, i32, i32) {
    %c0_i32 = arith.constant 0 : i32
    %c0_i32_0 = arith.constant 0 : i32
    %c0_i32_1 = arith.constant 0 : i32
    return %c0_i32, %arg0, %c0_i32_0 : i32, i32, i32
  }
}

</mosaic_0001>

<llo_original>
// kernel: multi_head_attention.2
$region0: #{multi_head_attention.2}
  #allocation0 [shape = 'u32[]', space=smem, size = 0x4, offset = 0x4, fixed_abs, tag = 'smem constant byte address 0x4 - core index']
  #allocation1 [shape = 'u32[144,128]{1,0:T(1,128)}', space=vmem, size = 0x12000, scoped, tag = 'internal scratch']
  %s0 = inlined_call_operand.vmem [shape: f32[8,32], index: 0, kind: input, shape index: {}]
  %s1 = inlined_call_operand.vmem [shape: bf16[32,96], index: 1, kind: input, shape index: {}]
  %s2 = inlined_call_operand.vmem [shape: f32[1,96], index: 2, kind: input, shape index: {}]
  %s3 = inlined_call_operand.vmem [shape: f32[4,8,8], index: 3, kind: output, shape index: {0}]
  %s4 = inlined_call_operand.vmem [shape: f32[4,8,8], index: 4, kind: output, shape index: {1}]
  %s5 = inlined_call_operand.vmem [shape: f32[4,8,8], index: 5, kind: output, shape index: {2}]
  %6 = xla_tuple %s3, %s4, %s5
  %s7 = sld [smem:[#allocation0]]
  $region38: #{multi_head_attention.2} parent=0
    _
  %s9 = ssub.s32 1, %s7
  %s10 = scalar_select 0, %s9, %s7
  // Predicated region
  $region2: #{multi_head_attention.2} parent=0 // pred_check
    _
  $region3: #{multi_head_attention.2} parent=0 // pred_check_branch
    %12 = sbr.rel (0) target = $region5
  $region4: #{multi_head_attention.2} parent=0 // pred_region
    _
  $region5: #{multi_head_attention.2} parent=0 // pred_fallthru
    _
  // Predicated region
  $region6: #{multi_head_attention.2} parent=0 // pred_check
    _
  $region7: #{multi_head_attention.2} parent=0 // pred_check_branch
    %14 = sbr.rel (0) target = $region9
  $region8: #{multi_head_attention.2} parent=0 // pred_region
    _
  $region9: #{multi_head_attention.2} parent=0 // pred_fallthru
    _
  // Predicated region
  $region10: #{multi_head_attention.2} parent=0 // pred_check
    _
  $region11: #{multi_head_attention.2} parent=0 // pred_check_branch
    %16 = sbr.rel (0) target = $region13
  $region12: #{multi_head_attention.2} parent=0 // pred_region
    _
  $region13: #{multi_head_attention.2} parent=0 // pred_fallthru
    _
  %v18 = vld [vmem:[%s0] sm:$0xff]
  %v19 = vpack.c.bf16 %v18, %v18
  %v20 = vld [vmem:[%s1] sm:$0xf]
  %v21 = vld [vmem:[%s1 + $0x4] sm:$0xf]
  %v22 = vld [vmem:[%s1 + $0x8] sm:$0xf]
  %v23 = vld [vmem:[%s1 + $0xc] sm:$0xf]
  %v24 = vld [vmem:[%s2] sm:$0x1]
  %v26 = vlaneseq
  %v27 = vshrl.u32 %v26, 7
  %v28 = vsub.s32 0, %v27
  %v29 = vrot.slane %v24, %v28
  %v35 = vunpack.c.l.b16 %v20
  %v36 = vunpack.c.l.b16 %v21
  %v37 = vunpack.c.l.b16 %v22
  %v38 = vunpack.c.l.b16 %v23
  %v39 = vpack.c.b16 %v36, %v35
  %v40 = vpack.c.b16 %v38, %v37
  %vm43 = vcmask 261120
  %v45 = vsel %vm43, %v19, 0
  %47 = vmatprep.subr.bf16.mxu0 0
  %48 = vmatpush1.bf16.msra.mxu0 %v39
  %49 = vmatprep.subr.bf16.mxu0 0
  %50 = vmatpush1.bf16.msra.mxu0 %v40
  %51 = vmatprep.subr.bf16.mxu0 0
  %52 = vmatpush1.bf16.msra.mxu0 0
  %53 = vmatprep.subr.bf16.mxu0 0
  %54 = vmatpush1.bf16.msra.mxu0 0
  %55 = vmatprep.subr.bf16.mxu0 0
  %56 = vmatpush1.bf16.msra.mxu0 0
  %57 = vmatprep.subr.bf16.mxu0 0
  %58 = vmatpush1.bf16.msra.mxu0 0
  %59 = vmatprep.subr.bf16.mxu0 0
  %60 = vmatpush1.bf16.msra.mxu0 0
  %61 = vmatprep.subr.bf16.mxu0 0
  %62 = vmatpush1.bf16.msra.mxu0 0
  %63 = vmatprep.subr.bf16.mxu0 0
  %64 = vmatpush1.bf16.msra.mxu0 0
  %65 = vmatprep.subr.bf16.mxu0 0
  %66 = vmatpush1.bf16.msra.mxu0 0
  %67 = vmatprep.subr.bf16.mxu0 0
  %68 = vmatpush1.bf16.msra.mxu0 0
  %69 = vmatprep.subr.bf16.mxu0 0
  %70 = vmatpush1.bf16.msra.mxu0 0
  %71 = vmatprep.subr.bf16.mxu0 0
  %72 = vmatpush1.bf16.msra.mxu0 0
  %73 = vmatprep.subr.bf16.mxu0 0
  %74 = vmatpush1.bf16.msra.mxu0 0
  %75 = vmatprep.subr.bf16.mxu0 0
  %76 = vmatpush1.bf16.msra.mxu0 0
  %77 = vmatprep.subr.bf16.mxu0 0
  %78 = vmatpush1.bf16.msra.mxu0 0
  %79 = vmatprep.mubr.bf16.mxu0 0
  %80 = vmatmul.mubr.bf16.gmra.mrb[0].mxu0 %v45
  %v81 = vpop.f32.mrb[0].mxu0
  %v82 = vadd.f32 %v29, %v81
  %v83 = vpop.f32.mrb[0].mxu0
  %v84 = vpop.f32.mrb[0].mxu0
  %v85 = vpop.f32.mrb[0].mxu0
  %86 = vdwg.mxu0
  %v87 = vmul.f32 %v82, 0.35355338
  %89 = vrot.lane.b32.xlu0 %v87, 120
  %v90 = vpop.permute.xlu0 %89
  %92 = vrot.lane.b32.xlu0 %v87, 112
  %v93 = vpop.permute.xlu0 %92
  %95 = vrot.lane.b32.xlu0 %v87, 104
  %v96 = vpop.permute.xlu0 %95
  %v98 = vcombine.low %v87, %v93
  %v99 = vcombine.high %v87, %v93
  %v101 = vunpack.c.l.s4 1983009808
  %v102 = vunpack.c.0.s8 %v101
  %v103 = vlaneseq
  %v104 = vshrl.u32 %v103, 7
  %v105 = vsub.s32 %v102, %v104
  %v106 = vrot.slane %v98, %v105
  %v108 = vunpack.c.l.s4 1983009808
  %v109 = vunpack.c.0.s8 %v108
  %v110 = vlaneseq
  %v111 = vshrl.u32 %v110, 7
  %v112 = vsub.s32 %v109, %v111
  %v113 = vrot.slane %v99, %v112
  %v114 = vcombine.low %v90, %v96
  %v115 = vcombine.high %v90, %v96
  %v117 = vunpack.c.l.s4 1983009808
  %v118 = vunpack.c.0.s8 %v117
  %v119 = vlaneseq
  %v120 = vshrl.u32 %v119, 7
  %v121 = vsub.s32 %v118, %v120
  %v122 = vrot.slane %v114, %v121
  %v124 = vunpack.c.l.s4 1983009808
  %v125 = vunpack.c.0.s8 %v124
  %v126 = vlaneseq
  %v127 = vshrl.u32 %v126, 7
  %v128 = vsub.s32 %v125, %v127
  %v129 = vrot.slane %v115, %v128
  %v130 = vcombine.low %v106, %v122
  %v131 = vcombine.high %v106, %v122
  %v133 = vunpack.c.l.s4 1934713408
  %v134 = vunpack.c.0.s8 %v133
  %v135 = vlaneseq
  %v136 = vshrl.u32 %v135, 7
  %v137 = vsub.s32 %v134, %v136
  %v138 = vrot.slane %v130, %v137
  %v140 = vunpack.c.l.s4 1934713408
  %v141 = vunpack.c.0.s8 %v140
  %v142 = vlaneseq
  %v143 = vshrl.u32 %v142, 7
  %v144 = vsub.s32 %v141, %v143
  %v145 = vrot.slane %v131, %v144
  %v146 = vcombine.low %v113, %v129
  %v147 = vcombine.high %v113, %v129
  %v149 = vunpack.c.l.s4 1934713408
  %v150 = vunpack.c.0.s8 %v149
  %v151 = vlaneseq
  %v152 = vshrl.u32 %v151, 7
  %v153 = vsub.s32 %v150, %v152
  %v154 = vrot.slane %v146, %v153
  %v156 = vunpack.c.l.s4 1934713408
  %v157 = vunpack.c.0.s8 %v156
  %v158 = vlaneseq
  %v159 = vshrl.u32 %v158, 7
  %v160 = vsub.s32 %v157, %v159
  %v161 = vrot.slane %v147, %v160
  %v162 = vcombine.high %v138, 0.0
  %v163 = vcombine.high %v145, 0.0
  %v164 = vcombine.high %v154, 0.0
  %v165 = vcombine.high %v161, 0.0
  %v166 = vcombine.low %v138, %v145
  %v168 = vunpack.c.l.s4 1983009808
  %v169 = vunpack.c.0.s8 %v168
  %v170 = vlaneseq
  %v171 = vshrl.u32 %v170, 7
  %v172 = vsub.s32 %v169, %v171
  %v173 = vrot.slane %v166, %v172
  %v174 = vcombine.low %v162, %v163
  %v176 = vunpack.c.l.s4 1983009808
  %v177 = vunpack.c.0.s8 %v176
  %v178 = vlaneseq
  %v179 = vshrl.u32 %v178, 7
  %v180 = vsub.s32 %v177, %v179
  %v181 = vrot.slane %v174, %v180
  %v182 = vcombine.low %v154, %v161
  %v184 = vunpack.c.l.s4 1983009808
  %v185 = vunpack.c.0.s8 %v184
  %v186 = vlaneseq
  %v187 = vshrl.u32 %v186, 7
  %v188 = vsub.s32 %v185, %v187
  %v189 = vrot.slane %v182, %v188
  %v190 = vcombine.low %v164, %v165
  %v192 = vunpack.c.l.s4 1983009808
  %v193 = vunpack.c.0.s8 %v192
  %v194 = vlaneseq
  %v195 = vshrl.u32 %v194, 7
  %v196 = vsub.s32 %v193, %v195
  %v197 = vrot.slane %v190, %v196
  %v198 = vcombine.low %v173, %v181
  %v199 = vcombine.high %v173, %v181
  %v201 = vunpack.c.l.s4 1934713408
  %v202 = vunpack.c.0.s8 %v201
  %v203 = vlaneseq
  %v204 = vshrl.u32 %v203, 7
  %v205 = vsub.s32 %v202, %v204
  %v206 = vrot.slane %v198, %v205
  %v208 = vunpack.c.l.s4 1934713408
  %v209 = vunpack.c.0.s8 %v208
  %v210 = vlaneseq
  %v211 = vshrl.u32 %v210, 7
  %v212 = vsub.s32 %v209, %v211
  %v213 = vrot.slane %v199, %v212
  %v214 = vcombine.low %v189, %v197
  %v215 = vcombine.high %v189, %v197
  %v217 = vunpack.c.l.s4 1934713408
  %v218 = vunpack.c.0.s8 %v217
  %v219 = vlaneseq
  %v220 = vshrl.u32 %v219, 7
  %v221 = vsub.s32 %v218, %v220
  %v222 = vrot.slane %v214, %v221
  %v224 = vunpack.c.l.s4 1934713408
  %v225 = vunpack.c.0.s8 %v224
  %v226 = vlaneseq
  %v227 = vshrl.u32 %v226, 7
  %v228 = vsub.s32 %v225, %v227
  %v229 = vrot.slane %v215, %v228
  %v230 = vcombine.low %v206, %v222
  %v231 = vcombine.high %v206, %v222
  %v232 = vcombine.low %v213, %v229
  %v233 = vcombine.high %v213, %v229
  %vm234 = vcmask 64512
  %235 = vst.msk [vmem:[%s3] sm:$0xff] %vm234, %v230
  %236 = vst.msk [vmem:[%s3 + $0x8] sm:$0xff] %vm234, %v231
  %237 = vst.msk [vmem:[%s3 + $0x10] sm:$0xff] %vm234, %v232
  %238 = vst.msk [vmem:[%s3 + $0x18] sm:$0xff] %vm234, %v233
  %240 = vrot.lane.b32.xlu0 %v82, 120
  %v241 = vpop.permute.xlu0 %240
  %242 = vrot.lane.b32.xlu0 %v82, 112
  %v243 = vpop.permute.xlu0 %242
  %244 = vrot.lane.b32.xlu0 %v82, 104
  %v245 = vpop.permute.xlu0 %244
  %246 = vrot.lane.b32.xlu0 %v82, 96
  %v247 = vpop.permute.xlu0 %246
  %248 = vrot.lane.b32.xlu0 %v241, 96
  %v249 = vpop.permute.xlu0 %248
  %250 = vrot.lane.b32.xlu0 %v243, 96
  %v251 = vpop.permute.xlu0 %250
  %252 = vrot.lane.b32.xlu0 %v245, 96
  %v253 = vpop.permute.xlu0 %252
  %v258 = vcombine.low %v247, %v251
  %v259 = vcombine.high %v247, %v251
  %v261 = vunpack.c.l.s4 1983009808
  %v262 = vunpack.c.0.s8 %v261
  %v263 = vlaneseq
  %v264 = vshrl.u32 %v263, 7
  %v265 = vsub.s32 %v262, %v264
  %v266 = vrot.slane %v258, %v265
  %v268 = vunpack.c.l.s4 1983009808
  %v269 = vunpack.c.0.s8 %v268
  %v270 = vlaneseq
  %v271 = vshrl.u32 %v270, 7
  %v272 = vsub.s32 %v269, %v271
  %v273 = vrot.slane %v259, %v272
  %v274 = vcombine.low %v249, %v253
  %v275 = vcombine.high %v249, %v253
  %v277 = vunpack.c.l.s4 1983009808
  %v278 = vunpack.c.0.s8 %v277
  %v279 = vlaneseq
  %v280 = vshrl.u32 %v279, 7
  %v281 = vsub.s32 %v278, %v280
  %v282 = vrot.slane %v274, %v281
  %v284 = vunpack.c.l.s4 1983009808
  %v285 = vunpack.c.0.s8 %v284
  %v286 = vlaneseq
  %v287 = vshrl.u32 %v286, 7
  %v288 = vsub.s32 %v285, %v287
  %v289 = vrot.slane %v275, %v288
  %v290 = vcombine.low %v266, %v282
  %v291 = vcombine.high %v266, %v282
  %v293 = vunpack.c.l.s4 1934713408
  %v294 = vunpack.c.0.s8 %v293
  %v295 = vlaneseq
  %v296 = vshrl.u32 %v295, 7
  %v297 = vsub.s32 %v294, %v296
  %v298 = vrot.slane %v290, %v297
  %v300 = vunpack.c.l.s4 1934713408
  %v301 = vunpack.c.0.s8 %v300
  %v302 = vlaneseq
  %v303 = vshrl.u32 %v302, 7
  %v304 = vsub.s32 %v301, %v303
  %v305 = vrot.slane %v291, %v304
  %v306 = vcombine.low %v273, %v289
  %v307 = vcombine.high %v273, %v289
  %v309 = vunpack.c.l.s4 1934713408
  %v310 = vunpack.c.0.s8 %v309
  %v311 = vlaneseq
  %v312 = vshrl.u32 %v311, 7
  %v313 = vsub.s32 %v310, %v312
  %v314 = vrot.slane %v306, %v313
  %v316 = vunpack.c.l.s4 1934713408
  %v317 = vunpack.c.0.s8 %v316
  %v318 = vlaneseq
  %v319 = vshrl.u32 %v318, 7
  %v320 = vsub.s32 %v317, %v319
  %v321 = vrot.slane %v307, %v320
  %v322 = vcombine.high %v298, 0.0
  %v323 = vcombine.high %v305, 0.0
  %v324 = vcombine.high %v314, 0.0
  %v325 = vcombine.high %v321, 0.0
  %v326 = vcombine.low %v298, %v305
  %v328 = vunpack.c.l.s4 1983009808
  %v329 = vunpack.c.0.s8 %v328
  %v330 = vlaneseq
  %v331 = vshrl.u32 %v330, 7
  %v332 = vsub.s32 %v329, %v331
  %v333 = vrot.slane %v326, %v332
  %v334 = vcombine.low %v322, %v323
  %v336 = vunpack.c.l.s4 1983009808
  %v337 = vunpack.c.0.s8 %v336
  %v338 = vlaneseq
  %v339 = vshrl.u32 %v338, 7
  %v340 = vsub.s32 %v337, %v339
  %v341 = vrot.slane %v334, %v340
  %v342 = vcombine.low %v314, %v321
  %v344 = vunpack.c.l.s4 1983009808
  %v345 = vunpack.c.0.s8 %v344
  %v346 = vlaneseq
  %v347 = vshrl.u32 %v346, 7
  %v348 = vsub.s32 %v345, %v347
  %v349 = vrot.slane %v342, %v348
  %v350 = vcombine.low %v324, %v325
  %v352 = vunpack.c.l.s4 1983009808
  %v353 = vunpack.c.0.s8 %v352
  %v354 = vlaneseq
  %v355 = vshrl.u32 %v354, 7
  %v356 = vsub.s32 %v353, %v355
  %v357 = vrot.slane %v350, %v356
  %v358 = vcombine.low %v333, %v341
  %v359 = vcombine.high %v333, %v341
  %v361 = vunpack.c.l.s4 1934713408
  %v362 = vunpack.c.0.s8 %v361
  %v363 = vlaneseq
  %v364 = vshrl.u32 %v363, 7
  %v365 = vsub.s32 %v362, %v364
  %v366 = vrot.slane %v358, %v365
  %v368 = vunpack.c.l.s4 1934713408
  %v369 = vunpack.c.0.s8 %v368
  %v370 = vlaneseq
  %v371 = vshrl.u32 %v370, 7
  %v372 = vsub.s32 %v369, %v371
  %v373 = vrot.slane %v359, %v372
  %v374 = vcombine.low %v349, %v357
  %v375 = vcombine.high %v349, %v357
  %v377 = vunpack.c.l.s4 1934713408
  %v378 = vunpack.c.0.s8 %v377
  %v379 = vlaneseq
  %v380 = vshrl.u32 %v379, 7
  %v381 = vsub.s32 %v378, %v380
  %v382 = vrot.slane %v374, %v381
  %v384 = vunpack.c.l.s4 1934713408
  %v385 = vunpack.c.0.s8 %v384
  %v386 = vlaneseq
  %v387 = vshrl.u32 %v386, 7
  %v388 = vsub.s32 %v385, %v387
  %v389 = vrot.slane %v375, %v388
  %v390 = vcombine.low %v366, %v382
  %v391 = vcombine.high %v366, %v382
  %v392 = vcombine.low %v373, %v389
  %v393 = vcombine.high %v373, %v389
  %394 = vst.msk [vmem:[%s4] sm:$0xff] %vm234, %v390
  %395 = vst.msk [vmem:[%s4 + $0x8] sm:$0xff] %vm234, %v391
  %396 = vst.msk [vmem:[%s4 + $0x10] sm:$0xff] %vm234, %v392
  %397 = vst.msk [vmem:[%s4 + $0x18] sm:$0xff] %vm234, %v393
  %398 = vrot.lane.b32.xlu0 %v82, 64
  %v399 = vpop.permute.xlu0 %398
  %400 = vrot.lane.b32.xlu0 %v241, 64
  %v401 = vpop.permute.xlu0 %400
  %402 = vrot.lane.b32.xlu0 %v243, 64
  %v403 = vpop.permute.xlu0 %402
  %404 = vrot.lane.b32.xlu0 %v245, 64
  %v405 = vpop.permute.xlu0 %404
  %v410 = vcombine.low %v399, %v403
  %v411 = vcombine.high %v399, %v403
  %v413 = vunpack.c.l.s4 1983009808
  %v414 = vunpack.c.0.s8 %v413
  %v415 = vlaneseq
  %v416 = vshrl.u32 %v415, 7
  %v417 = vsub.s32 %v414, %v416
  %v418 = vrot.slane %v410, %v417
  %v420 = vunpack.c.l.s4 1983009808
  %v421 = vunpack.c.0.s8 %v420
  %v422 = vlaneseq
  %v423 = vshrl.u32 %v422, 7
  %v424 = vsub.s32 %v421, %v423
  %v425 = vrot.slane %v411, %v424
  %v426 = vcombine.low %v401, %v405
  %v427 = vcombine.high %v401, %v405
  %v429 = vunpack.c.l.s4 1983009808
  %v430 = vunpack.c.0.s8 %v429
  %v431 = vlaneseq
  %v432 = vshrl.u32 %v431, 7
  %v433 = vsub.s32 %v430, %v432
  %v434 = vrot.slane %v426, %v433
  %v436 = vunpack.c.l.s4 1983009808
  %v437 = vunpack.c.0.s8 %v436
  %v438 = vlaneseq
  %v439 = vshrl.u32 %v438, 7
  %v440 = vsub.s32 %v437, %v439
  %v441 = vrot.slane %v427, %v440
  %v442 = vcombine.low %v418, %v434
  %v443 = vcombine.high %v418, %v434
  %v445 = vunpack.c.l.s4 1934713408
  %v446 = vunpack.c.0.s8 %v445
  %v447 = vlaneseq
  %v448 = vshrl.u32 %v447, 7
  %v449 = vsub.s32 %v446, %v448
  %v450 = vrot.slane %v442, %v449
  %v452 = vunpack.c.l.s4 1934713408
  %v453 = vunpack.c.0.s8 %v452
  %v454 = vlaneseq
  %v455 = vshrl.u32 %v454, 7
  %v456 = vsub.s32 %v453, %v455
  %v457 = vrot.slane %v443, %v456
  %v458 = vcombine.low %v425, %v441
  %v459 = vcombine.high %v425, %v441
  %v461 = vunpack.c.l.s4 1934713408
  %v462 = vunpack.c.0.s8 %v461
  %v463 = vlaneseq
  %v464 = vshrl.u32 %v463, 7
  %v465 = vsub.s32 %v462, %v464
  %v466 = vrot.slane %v458, %v465
  %v468 = vunpack.c.l.s4 1934713408
  %v469 = vunpack.c.0.s8 %v468
  %v470 = vlaneseq
  %v471 = vshrl.u32 %v470, 7
  %v472 = vsub.s32 %v469, %v471
  %v473 = vrot.slane %v459, %v472
  %v474 = vcombine.high %v450, 0.0
  %v475 = vcombine.high %v457, 0.0
  %v476 = vcombine.high %v466, 0.0
  %v477 = vcombine.high %v473, 0.0
  %v478 = vcombine.low %v450, %v457
  %v480 = vunpack.c.l.s4 1983009808
  %v481 = vunpack.c.0.s8 %v480
  %v482 = vlaneseq
  %v483 = vshrl.u32 %v482, 7
  %v484 = vsub.s32 %v481, %v483
  %v485 = vrot.slane %v478, %v484
  %v486 = vcombine.low %v474, %v475
  %v488 = vunpack.c.l.s4 1983009808
  %v489 = vunpack.c.0.s8 %v488
  %v490 = vlaneseq
  %v491 = vshrl.u32 %v490, 7
  %v492 = vsub.s32 %v489, %v491
  %v493 = vrot.slane %v486, %v492
  %v494 = vcombine.low %v466, %v473
  %v496 = vunpack.c.l.s4 1983009808
  %v497 = vunpack.c.0.s8 %v496
  %v498 = vlaneseq
  %v499 = vshrl.u32 %v498, 7
  %v500 = vsub.s32 %v497, %v499
  %v501 = vrot.slane %v494, %v500
  %v502 = vcombine.low %v476, %v477
  %v504 = vunpack.c.l.s4 1983009808
  %v505 = vunpack.c.0.s8 %v504
  %v506 = vlaneseq
  %v507 = vshrl.u32 %v506, 7
  %v508 = vsub.s32 %v505, %v507
  %v509 = vrot.slane %v502, %v508
  %v510 = vcombine.low %v485, %v493
  %v511 = vcombine.high %v485, %v493
  %v513 = vunpack.c.l.s4 1934713408
  %v514 = vunpack.c.0.s8 %v513
  %v515 = vlaneseq
  %v516 = vshrl.u32 %v515, 7
  %v517 = vsub.s32 %v514, %v516
  %v518 = vrot.slane %v510, %v517
  %v520 = vunpack.c.l.s4 1934713408
  %v521 = vunpack.c.0.s8 %v520
  %v522 = vlaneseq
  %v523 = vshrl.u32 %v522, 7
  %v524 = vsub.s32 %v521, %v523
  %v525 = vrot.slane %v511, %v524
  %v526 = vcombine.low %v501, %v509
  %v527 = vcombine.high %v501, %v509
  %v529 = vunpack.c.l.s4 1934713408
  %v530 = vunpack.c.0.s8 %v529
  %v531 = vlaneseq
  %v532 = vshrl.u32 %v531, 7
  %v533 = vsub.s32 %v530, %v532
  %v534 = vrot.slane %v526, %v533
  %v536 = vunpack.c.l.s4 1934713408
  %v537 = vunpack.c.0.s8 %v536
  %v538 = vlaneseq
  %v539 = vshrl.u32 %v538, 7
  %v540 = vsub.s32 %v537, %v539
  %v541 = vrot.slane %v527, %v540
  %v542 = vcombine.low %v518, %v534
  %v543 = vcombine.high %v518, %v534
  %v544 = vcombine.low %v525, %v541
  %v545 = vcombine.high %v525, %v541
  %546 = vst.msk [vmem:[%s5] sm:$0xff] %vm234, %v542
  %547 = vst.msk [vmem:[%s5 + $0x8] sm:$0xff] %vm234, %v543
  %548 = vst.msk [vmem:[%s5 + $0x10] sm:$0xff] %vm234, %v544
  %549 = vst.msk [vmem:[%s5 + $0x18] sm:$0xff] %vm234, %v545
  // Predicated region
  $region14: #{multi_head_attention.2} parent=0 // pred_check
    _
  $region15: #{multi_head_attention.2} parent=0 // pred_check_branch
    %551 = sbr.rel (0) target = $region17
  $region16: #{multi_head_attention.2} parent=0 // pred_region
    _
  $region17: #{multi_head_attention.2} parent=0 // pred_fallthru
    _
  // Predicated region
  $region18: #{multi_head_attention.2} parent=0 // pred_check
    _
  $region19: #{multi_head_attention.2} parent=0 // pred_check_branch
    %553 = sbr.rel (0) target = $region21
  $region20: #{multi_head_attention.2} parent=0 // pred_region
    _
  $region21: #{multi_head_attention.2} parent=0 // pred_fallthru
    _
  // Predicated region
  $region22: #{multi_head_attention.2} parent=0 // pred_check
    _
  $region23: #{multi_head_attention.2} parent=0 // pred_check_branch
    %555 = sbr.rel (0) target = $region25
  $region24: #{multi_head_attention.2} parent=0 // pred_region
    _
  $region25: #{multi_head_attention.2} parent=0 // pred_fallthru
    _
  // Predicated region
  $region26: #{multi_head_attention.2} parent=0 // pred_check
    _
  $region27: #{multi_head_attention.2} parent=0 // pred_check_branch
    %557 = sbr.rel (0) target = $region29
  $region28: #{multi_head_attention.2} parent=0 // pred_region
    _
  $region29: #{multi_head_attention.2} parent=0 // pred_fallthru
    _
  // Predicated region
  $region30: #{multi_head_attention.2} parent=0 // pred_check
    _
  $region31: #{multi_head_attention.2} parent=0 // pred_check_branch
    %559 = sbr.rel (0) target = $region33
  $region32: #{multi_head_attention.2} parent=0 // pred_region
    _
  $region33: #{multi_head_attention.2} parent=0 // pred_fallthru
    _
  // Predicated region
  $region34: #{multi_head_attention.2} parent=0 // pred_check
    _
  $region35: #{multi_head_attention.2} parent=0 // pred_check_branch
    %561 = sbr.rel (0) target = $region37
  $region36: #{multi_head_attention.2} parent=0 // pred_region
    _
  $region37: #{multi_head_attention.2} parent=0 // pred_fallthru
    _

// kernel: multi_head_attention.3
$region0: #{multi_head_attention.3}
  #allocation0 [shape = 'u32[]', space=smem, size = 0x4, offset = 0x4, fixed_abs, tag = 'smem constant byte address 0x4 - core index']
  #allocation1 [shape = 'u32[144,128]{1,0:T(1,128)}', space=vmem, size = 0x12000, scoped, tag = 'internal scratch']
  %s0 = inlined_call_operand.vmem [shape: f32[4,8,8], index: 0, kind: input, shape index: {}]
  %s1 = inlined_call_operand.vmem [shape: f32[4,8,8], index: 1, kind: input, shape index: {}]
  %s2 = inlined_call_operand.vmem [shape: f32[4,8,8], index: 2, kind: input, shape index: {}]
  %s3 = inlined_call_operand.vmem [shape: f32[8,32], index: 3, kind: input, shape index: {}]
  %s4 = inlined_call_operand.vmem [shape: bf16[4,8,32], index: 4, kind: input, shape index: {}]
  %s5 = inlined_call_operand.vmem [shape: f32[1,32], index: 5, kind: input, shape index: {}]
  %s6 = inlined_call_operand.vmem [shape: f32[1,32], index: 6, kind: input, shape index: {}]
  %s7 = inlined_call_operand.vmem [shape: f32[1,32], index: 7, kind: input, shape index: {}]
  %s8 = inlined_call_operand.hbm [shape: f32[8,32], index: 8, kind: output, shape index: {0}]
  %s9 = inlined_call_operand.hbm [shape: f32[4,8,8], index: 9, kind: output, shape index: {1}]
  %10 = xla_tuple %s8, %s9
  %s11 = sld [smem:[#allocation0]]
  $region50: #{multi_head_attention.3} parent=0
    _
  %s13 = ssub.s32 1, %s11
  %s14 = scalar_select 0, %s13, %s11
  $region1: #{multi_head_attention.3} parent=0
    #allocation2 [shape = 'u8[4096]{0}', space=vmem, size = 0x1000, scoped, tag = 'output window, operand 0, single buffered']
    #allocation3 [shape = 's32[1]{0}', space=sflag, size = 0x4, scoped, tag = 'scoped memory for multi_head_attention.3']
    #allocation4 [shape = 'u8[16384]{0}', space=vmem, size = 0x4000, scoped, tag = 'output window, operand 1, single buffered']
    #allocation5 [shape = 's32[1]{0}', space=sflag, size = 0x4, scoped, tag = 'scoped memory for multi_head_attention.3']
    %15 = vsyncpa [#allocation3], 0
    %16 = vsyncpa [#allocation5], 0
    // Predicated region
    $region2: #{multi_head_attention.3} parent=1 // pred_check
      _
    $region3: #{multi_head_attention.3} parent=1 // pred_check_branch
      %18 = sbr.rel (0) target = $region5
    $region4: #{multi_head_attention.3} parent=1 // pred_region
      _
    $region5: #{multi_head_attention.3} parent=1 // pred_fallthru
      _
    // Predicated region
    $region6: #{multi_head_attention.3} parent=1 // pred_check
      _
    $region7: #{multi_head_attention.3} parent=1 // pred_check_branch
      %20 = sbr.rel (0) target = $region9
    $region8: #{multi_head_attention.3} parent=1 // pred_region
      _
    $region9: #{multi_head_attention.3} parent=1 // pred_fallthru
      _
    // Predicated region
    $region10: #{multi_head_attention.3} parent=1 // pred_check
      _
    $region11: #{multi_head_attention.3} parent=1 // pred_check_branch
      %22 = sbr.rel (0) target = $region13
    $region12: #{multi_head_attention.3} parent=1 // pred_region
      _
    $region13: #{multi_head_attention.3} parent=1 // pred_fallthru
      _
    // Predicated region
    $region14: #{multi_head_attention.3} parent=1 // pred_check
      _
    $region15: #{multi_head_attention.3} parent=1 // pred_check_branch
      %24 = sbr.rel (0) target = $region17
    $region16: #{multi_head_attention.3} parent=1 // pred_region
      _
    $region17: #{multi_head_attention.3} parent=1 // pred_fallthru
      _
    // Predicated region
    $region18: #{multi_head_attention.3} parent=1 // pred_check
      _
    $region19: #{multi_head_attention.3} parent=1 // pred_check_branch
      %26 = sbr.rel (0) target = $region21
    $region20: #{multi_head_attention.3} parent=1 // pred_region
      _
    $region21: #{multi_head_attention.3} parent=1 // pred_fallthru
      _
    // Predicated region
    $region22: #{multi_head_attention.3} parent=1 // pred_check
      _
    $region23: #{multi_head_attention.3} parent=1 // pred_check_branch
      %28 = sbr.rel (0) target = $region25
    $region24: #{multi_head_attention.3} parent=1 // pred_region
      _
    $region25: #{multi_head_attention.3} parent=1 // pred_fallthru
      _
    // Predicated region
    $region26: #{multi_head_attention.3} parent=1 // pred_check
      _
    $region27: #{multi_head_attention.3} parent=1 // pred_check_branch
      %30 = sbr.rel (0) target = $region29
    $region28: #{multi_head_attention.3} parent=1 // pred_region
      _
    $region29: #{multi_head_attention.3} parent=1 // pred_fallthru
      _
    // Predicated region
    $region30: #{multi_head_attention.3} parent=1 // pred_check
      _
    $region31: #{multi_head_attention.3} parent=1 // pred_check_branch
      %32 = sbr.rel (0) target = $region33
    $region32: #{multi_head_attention.3} parent=1 // pred_region
      _
    $region33: #{multi_head_attention.3} parent=1 // pred_fallthru
      _
    %v34 = vld [vmem:[%s0] sm:$0xff]
    %v35 = vld [vmem:[%s0 + $0x8] sm:$0xff]
    %v36 = vld [vmem:[%s0 + $0x10] sm:$0xff]
    %v37 = vld [vmem:[%s0 + $0x18] sm:$0xff]
    %v38 = vpack.c.bf16 %v34, %v34
    %v39 = vpack.c.bf16 %v35, %v35
    %v40 = vpack.c.bf16 %v36, %v36
    %v41 = vpack.c.bf16 %v37, %v37
    %v42 = vld [vmem:[%s1] sm:$0xff]
    %v43 = vld [vmem:[%s1 + $0x8] sm:$0xff]
    %v44 = vld [vmem:[%s1 + $0x10] sm:$0xff]
    %v45 = vld [vmem:[%s1 + $0x18] sm:$0xff]
    %v46 = vpack.c.bf16 %v42, %v42
    %v47 = vpack.c.bf16 %v43, %v43
    %v48 = vpack.c.bf16 %v44, %v44
    %v49 = vpack.c.bf16 %v45, %v45
    %v50 = vld [vmem:[%s2] sm:$0xff]
    %v51 = vld [vmem:[%s2 + $0x8] sm:$0xff]
    %v52 = vld [vmem:[%s2 + $0x10] sm:$0xff]
    %v53 = vld [vmem:[%s2 + $0x18] sm:$0xff]
    %v54 = vpack.c.bf16 %v50, %v50
    %v55 = vpack.c.bf16 %v51, %v51
    %v56 = vpack.c.bf16 %v52, %v52
    %v57 = vpack.c.bf16 %v53, %v53
    %vm58 = vcmask 64512
    %v60 = vsel %vm58, %v38, 0
    %v63 = vsel %vm58, %v46, 0
    %65 = vmatprep.subr.bf16.mxu0 0
    %66 = vmatpush1.bf16.xpose.msra.mxu0 %v63
    %67 = vmatprep.subr.bf16.mxu0 0
    %68 = vmatpush1.bf16.xpose.msra.mxu0 0
    %69 = vmatprep.subr.bf16.mxu0 0
    %70 = vmatpush1.bf16.xpose.msra.mxu0 0
    %71 = vmatprep.subr.bf16.mxu0 0
    %72 = vmatpush1.bf16.xpose.msra.mxu0 0
    %73 = vmatprep.subr.bf16.mxu0 0
    %74 = vmatpush1.bf16.xpose.msra.mxu0 0
    %75 = vmatprep.subr.bf16.mxu0 0
    %76 = vmatpush1.bf16.xpose.msra.mxu0 0
    %77 = vmatprep.subr.bf16.mxu0 0
    %78 = vmatpush1.bf16.xpose.msra.mxu0 0
    %79 = vmatprep.subr.bf16.mxu0 0
    %80 = vmatpush1.bf16.xpose.msra.mxu0 0
    %81 = vmatprep.subr.bf16.mxu0 0
    %82 = vmatpush1.bf16.xpose.msra.mxu0 0
    %83 = vmatprep.subr.bf16.mxu0 0
    %84 = vmatpush1.bf16.xpose.msra.mxu0 0
    %85 = vmatprep.subr.bf16.mxu0 0
    %86 = vmatpush1.bf16.xpose.msra.mxu0 0
    %87 = vmatprep.subr.bf16.mxu0 0
    %88 = vmatpush1.bf16.xpose.msra.mxu0 0
    %89 = vmatprep.subr.bf16.mxu0 0
    %90 = vmatpush1.bf16.xpose.msra.mxu0 0
    %91 = vmatprep.subr.bf16.mxu0 0
    %92 = vmatpush1.bf16.xpose.msra.mxu0 0
    %93 = vmatprep.subr.bf16.mxu0 0
    %94 = vmatpush1.bf16.xpose.msra.mxu0 0
    %95 = vmatprep.subr.bf16.mxu0 0
    %96 = vmatpush1.bf16.xpose.msra.mxu0 0
    %97 = vmatprep.mubr.bf16.mxu0 0
    %98 = vmatmul.mubr.bf16.gmra.mrb[0].mxu0 %v60
    %v99 = vpop.f32.mrb[0].mxu0
    %v100 = vadd.f32 0.0, %v99
    %v101 = vpop.f32.mrb[0].mxu0
    %v102 = vpop.f32.mrb[0].mxu0
    %v103 = vpop.f32.mrb[0].mxu0
    %104 = vdwg.mxu0
    %v106 = vsel %vm58, %v39, 0
    %v109 = vsel %vm58, %v47, 0
    %111 = vmatprep.subr.bf16.mxu0 0
    %112 = vmatpush1.bf16.xpose.msra.mxu0 %v109
    %113 = vmatprep.subr.bf16.mxu0 0
    %114 = vmatpush1.bf16.xpose.msra.mxu0 0
    %115 = vmatprep.subr.bf16.mxu0 0
    %116 = vmatpush1.bf16.xpose.msra.mxu0 0
    %117 = vmatprep.subr.bf16.mxu0 0
    %118 = vmatpush1.bf16.xpose.msra.mxu0 0
    %119 = vmatprep.subr.bf16.mxu0 0
    %120 = vmatpush1.bf16.xpose.msra.mxu0 0
    %121 = vmatprep.subr.bf16.mxu0 0
    %122 = vmatpush1.bf16.xpose.msra.mxu0 0
    %123 = vmatprep.subr.bf16.mxu0 0
    %124 = vmatpush1.bf16.xpose.msra.mxu0 0
    %125 = vmatprep.subr.bf16.mxu0 0
    %126 = vmatpush1.bf16.xpose.msra.mxu0 0
    %127 = vmatprep.subr.bf16.mxu0 0
    %128 = vmatpush1.bf16.xpose.msra.mxu0 0
    %129 = vmatprep.subr.bf16.mxu0 0
    %130 = vmatpush1.bf16.xpose.msra.mxu0 0
    %131 = vmatprep.subr.bf16.mxu0 0
    %132 = vmatpush1.bf16.xpose.msra.mxu0 0
    %133 = vmatprep.subr.bf16.mxu0 0
    %134 = vmatpush1.bf16.xpose.msra.mxu0 0
    %135 = vmatprep.subr.bf16.mxu0 0
    %136 = vmatpush1.bf16.xpose.msra.mxu0 0
    %137 = vmatprep.subr.bf16.mxu0 0
    %138 = vmatpush1.bf16.xpose.msra.mxu0 0
    %139 = vmatprep.subr.bf16.mxu0 0
    %140 = vmatpush1.bf16.xpose.msra.mxu0 0
    %141 = vmatprep.subr.bf16.mxu0 0
    %142 = vmatpush1.bf16.xpose.msra.mxu0 0
    %143 = vmatprep.mubr.bf16.mxu0 0
    %144 = vmatmul.mubr.bf16.gmra.mrb[0].mxu0 %v106
    %v145 = vpop.f32.mrb[0].mxu0
    %v146 = vadd.f32 0.0, %v145
    %v147 = vpop.f32.mrb[0].mxu0
    %v148 = vpop.f32.mrb[0].mxu0
    %v149 = vpop.f32.mrb[0].mxu0
    %150 = vdwg.mxu0
    %v152 = vsel %vm58, %v40, 0
    %v155 = vsel %vm58, %v48, 0
    %157 = vmatprep.subr.bf16.mxu0 0
    %158 = vmatpush1.bf16.xpose.msra.mxu0 %v155
    %159 = vmatprep.subr.bf16.mxu0 0
    %160 = vmatpush1.bf16.xpose.msra.mxu0 0
    %161 = vmatprep.subr.bf16.mxu0 0
    %162 = vmatpush1.bf16.xpose.msra.mxu0 0
    %163 = vmatprep.subr.bf16.mxu0 0
    %164 = vmatpush1.bf16.xpose.msra.mxu0 0
    %165 = vmatprep.subr.bf16.mxu0 0
    %166 = vmatpush1.bf16.xpose.msra.mxu0 0
    %167 = vmatprep.subr.bf16.mxu0 0
    %168 = vmatpush1.bf16.xpose.msra.mxu0 0
    %169 = vmatprep.subr.bf16.mxu0 0
    %170 = vmatpush1.bf16.xpose.msra.mxu0 0
    %171 = vmatprep.subr.bf16.mxu0 0
    %172 = vmatpush1.bf16.xpose.msra.mxu0 0
    %173 = vmatprep.subr.bf16.mxu0 0
    %174 = vmatpush1.bf16.xpose.msra.mxu0 0
    %175 = vmatprep.subr.bf16.mxu0 0
    %176 = vmatpush1.bf16.xpose.msra.mxu0 0
    %177 = vmatprep.subr.bf16.mxu0 0
    %178 = vmatpush1.bf16.xpose.msra.mxu0 0
    %179 = vmatprep.subr.bf16.mxu0 0
    %180 = vmatpush1.bf16.xpose.msra.mxu0 0
    %181 = vmatprep.subr.bf16.mxu0 0
    %182 = vmatpush1.bf16.xpose.msra.mxu0 0
    %183 = vmatprep.subr.bf16.mxu0 0
    %184 = vmatpush1.bf16.xpose.msra.mxu0 0
    %185 = vmatprep.subr.bf16.mxu0 0
    %186 = vmatpush1.bf16.xpose.msra.mxu0 0
    %187 = vmatprep.subr.bf16.mxu0 0
    %188 = vmatpush1.bf16.xpose.msra.mxu0 0
    %189 = vmatprep.mubr.bf16.mxu0 0
    %190 = vmatmul.mubr.bf16.gmra.mrb[0].mxu0 %v152
    %v191 = vpop.f32.mrb[0].mxu0
    %v192 = vadd.f32 0.0, %v191
    %v193 = vpop.f32.mrb[0].mxu0
    %v194 = vpop.f32.mrb[0].mxu0
    %v195 = vpop.f32.mrb[0].mxu0
    %196 = vdwg.mxu0
    %v198 = vsel %vm58, %v41, 0
    %v201 = vsel %vm58, %v49, 0
    %203 = vmatprep.subr.bf16.mxu0 0
    %204 = vmatpush1.bf16.xpose.msra.mxu0 %v201
    %205 = vmatprep.subr.bf16.mxu0 0
    %206 = vmatpush1.bf16.xpose.msra.mxu0 0
    %207 = vmatprep.subr.bf16.mxu0 0
    %208 = vmatpush1.bf16.xpose.msra.mxu0 0
    %209 = vmatprep.subr.bf16.mxu0 0
    %210 = vmatpush1.bf16.xpose.msra.mxu0 0
    %211 = vmatprep.subr.bf16.mxu0 0
    %212 = vmatpush1.bf16.xpose.msra.mxu0 0
    %213 = vmatprep.subr.bf16.mxu0 0
    %214 = vmatpush1.bf16.xpose.msra.mxu0 0
    %215 = vmatprep.subr.bf16.mxu0 0
    %216 = vmatpush1.bf16.xpose.msra.mxu0 0
    %217 = vmatprep.subr.bf16.mxu0 0
    %218 = vmatpush1.bf16.xpose.msra.mxu0 0
    %219 = vmatprep.subr.bf16.mxu0 0
    %220 = vmatpush1.bf16.xpose.msra.mxu0 0
    %221 = vmatprep.subr.bf16.mxu0 0
    %222 = vmatpush1.bf16.xpose.msra.mxu0 0
    %223 = vmatprep.subr.bf16.mxu0 0
    %224 = vmatpush1.bf16.xpose.msra.mxu0 0
    %225 = vmatprep.subr.bf16.mxu0 0
    %226 = vmatpush1.bf16.xpose.msra.mxu0 0
    %227 = vmatprep.subr.bf16.mxu0 0
    %228 = vmatpush1.bf16.xpose.msra.mxu0 0
    %229 = vmatprep.subr.bf16.mxu0 0
    %230 = vmatpush1.bf16.xpose.msra.mxu0 0
    %231 = vmatprep.subr.bf16.mxu0 0
    %232 = vmatpush1.bf16.xpose.msra.mxu0 0
    %233 = vmatprep.subr.bf16.mxu0 0
    %234 = vmatpush1.bf16.xpose.msra.mxu0 0
    %235 = vmatprep.mubr.bf16.mxu0 0
    %236 = vmatmul.mubr.bf16.gmra.mrb[0].mxu0 %v198
    %v237 = vpop.f32.mrb[0].mxu0
    %v238 = vadd.f32 0.0, %v237
    %v239 = vpop.f32.mrb[0].mxu0
    %v240 = vpop.f32.mrb[0].mxu0
    %v241 = vpop.f32.mrb[0].mxu0
    %242 = vdwg.mxu0
    %v243 = vsel %vm58, %v100, -inf
    %244 = vmax.xlane.f32.xlu0 %v243
    %v245 = vpop.xlane.xlu0 %244
    %v246 = vsel %vm58, %v146, -inf
    %247 = vmax.xlane.f32.xlu0 %v246
    %v248 = vpop.xlane.xlu0 %247
    %v249 = vsel %vm58, %v192, -inf
    %250 = vmax.xlane.f32.xlu0 %v249
    %v251 = vpop.xlane.xlu0 %250
    %v252 = vsel %vm58, %v238, -inf
    %253 = vmax.xlane.f32.xlu0 %v252
    %v254 = vpop.xlane.xlu0 %253
    %v255 = vsub.f32 %v100, %v245
    %v256 = vsub.f32 %v146, %v248
    %v257 = vsub.f32 %v192, %v251
    %v258 = vsub.f32 %v238, %v254
    %v259 = vmul.f32 %v255, 1.442695
    %v260 = vpow.pop %v259
    %v261 = vmul.f32 %v256, 1.442695
    %v262 = vpow.pop %v261
    %v263 = vmul.f32 %v257, 1.442695
    %v264 = vpow.pop %v263
    %v265 = vmul.f32 %v258, 1.442695
    %v266 = vpow.pop %v265
    %v267 = vsel %vm58, %v260, 0.0
    %268 = vadd.xlane.f32.xlu0 %v267
    %v269 = vpop.xlane.xlu0 %268
    %v270 = vsel %vm58, %v262, 0.0
    %271 = vadd.xlane.f32.xlu0 %v270
    %v272 = vpop.xlane.xlu0 %271
    %v273 = vsel %vm58, %v264, 0.0
    %274 = vadd.xlane.f32.xlu0 %v273
    %v275 = vpop.xlane.xlu0 %274
    %v276 = vsel %vm58, %v266, 0.0
    %277 = vadd.xlane.f32.xlu0 %v276
    %v278 = vpop.xlane.xlu0 %277
    %v279 = vrcp.pop %v269
    %v280 = vmul.f32 %v260, %v279
    %v281 = vrcp.pop %v272
    %v282 = vmul.f32 %v262, %v281
    %v283 = vrcp.pop %v275
    %v284 = vmul.f32 %v264, %v283
    %v285 = vrcp.pop %v278
    %v286 = vmul.f32 %v266, %v285
    %287 = vst.msk [vmem:[#allocation4] sm:$0xff] %vm58, %v280
    %288 = vst.msk [vmem:[#allocation4 + $0x8] sm:$0xff] %vm58, %v282
    %289 = vst.msk [vmem:[#allocation4 + $0x10] sm:$0xff] %vm58, %v284
    %290 = vst.msk [vmem:[#allocation4 + $0x18] sm:$0xff] %vm58, %v286
    %v291 = vpack.c.bf16 %v280, %v280
    %v292 = vpack.c.bf16 %v282, %v282
    %v293 = vpack.c.bf16 %v284, %v284
    %v294 = vpack.c.bf16 %v286, %v286
    %v296 = vsel %vm58, %v291, 0
    %vm298 = vcmask 1043456
    %v300 = vsel %vm298, %v54, 0
    %302 = vmatprep.subr.bf16.mxu0 0
    %303 = vmatpush1.bf16.msra.mxu0 %v300
    %304 = vmatprep.subr.bf16.mxu0 0
    %305 = vmatpush1.bf16.msra.mxu0 0
    %306 = vmatprep.subr.bf16.mxu0 0
    %307 = vmatpush1.bf16.msra.mxu0 0
    %308 = vmatprep.subr.bf16.mxu0 0
    %309 = vmatpush1.bf16.msra.mxu0 0
    %310 = vmatprep.subr.bf16.mxu0 0
    %311 = vmatpush1.bf16.msra.mxu0 0
    %312 = vmatprep.subr.bf16.mxu0 0
    %313 = vmatpush1.bf16.msra.mxu0 0
    %314 = vmatprep.subr.bf16.mxu0 0
    %315 = vmatpush1.bf16.msra.mxu0 0
    %316 = vmatprep.subr.bf16.mxu0 0
    %317 = vmatpush1.bf16.msra.mxu0 0
    %318 = vmatprep.subr.bf16.mxu0 0
    %319 = vmatpush1.bf16.msra.mxu0 0
    %320 = vmatprep.subr.bf16.mxu0 0
    %321 = vmatpush1.bf16.msra.mxu0 0
    %322 = vmatprep.subr.bf16.mxu0 0
    %323 = vmatpush1.bf16.msra.mxu0 0
    %324 = vmatprep.subr.bf16.mxu0 0
    %325 = vmatpush1.bf16.msra.mxu0 0
    %326 = vmatprep.subr.bf16.mxu0 0
    %327 = vmatpush1.bf16.msra.mxu0 0
    %328 = vmatprep.subr.bf16.mxu0 0
    %329 = vmatpush1.bf16.msra.mxu0 0
    %330 = vmatprep.subr.bf16.mxu0 0
    %331 = vmatpush1.bf16.msra.mxu0 0
    %332 = vmatprep.subr.bf16.mxu0 0
    %333 = vmatpush1.bf16.msra.mxu0 0
    %334 = vmatprep.mubr.bf16.mxu0 0
    %335 = vmatmul.mubr.bf16.gmra.mrb[0].mxu0 %v296
    %v336 = vpop.f32.mrb[0].mxu0
    %v337 = vadd.f32 0.0, %v336
    %v338 = vpop.f32.mrb[0].mxu0
    %v339 = vpop.f32.mrb[0].mxu0
    %v340 = vpop.f32.mrb[0].mxu0
    %341 = vdwg.mxu0
    %v343 = vsel %vm58, %v292, 0
    %v346 = vsel %vm298, %v55, 0
    %348 = vmatprep.subr.bf16.mxu0 0
    %349 = vmatpush1.bf16.msra.mxu0 %v346
    %350 = vmatprep.subr.bf16.mxu0 0
    %351 = vmatpush1.bf16.msra.mxu0 0
    %352 = vmatprep.subr.bf16.mxu0 0
    %353 = vmatpush1.bf16.msra.mxu0 0
    %354 = vmatprep.subr.bf16.mxu0 0
    %355 = vmatpush1.bf16.msra.mxu0 0
    %356 = vmatprep.subr.bf16.mxu0 0
    %357 = vmatpush1.bf16.msra.mxu0 0
    %358 = vmatprep.subr.bf16.mxu0 0
    %359 = vmatpush1.bf16.msra.mxu0 0
    %360 = vmatprep.subr.bf16.mxu0 0
    %361 = vmatpush1.bf16.msra.mxu0 0
    %362 = vmatprep.subr.bf16.mxu0 0
    %363 = vmatpush1.bf16.msra.mxu0 0
    %364 = vmatprep.subr.bf16.mxu0 0
    %365 = vmatpush1.bf16.msra.mxu0 0
    %366 = vmatprep.subr.bf16.mxu0 0
    %367 = vmatpush1.bf16.msra.mxu0 0
    %368 = vmatprep.subr.bf16.mxu0 0
    %369 = vmatpush1.bf16.msra.mxu0 0
    %370 = vmatprep.subr.bf16.mxu0 0
    %371 = vmatpush1.bf16.msra.mxu0 0
    %372 = vmatprep.subr.bf16.mxu0 0
    %373 = vmatpush1.bf16.msra.mxu0 0
    %374 = vmatprep.subr.bf16.mxu0 0
    %375 = vmatpush1.bf16.msra.mxu0 0
    %376 = vmatprep.subr.bf16.mxu0 0
    %377 = vmatpush1.bf16.msra.mxu0 0
    %378 = vmatprep.subr.bf16.mxu0 0
    %379 = vmatpush1.bf16.msra.mxu0 0
    %380 = vmatprep.mubr.bf16.mxu0 0
    %381 = vmatmul.mubr.bf16.gmra.mrb[0].mxu0 %v343
    %v382 = vpop.f32.mrb[0].mxu0
    %v383 = vadd.f32 0.0, %v382
    %v384 = vpop.f32.mrb[0].mxu0
    %v385 = vpop.f32.mrb[0].mxu0
    %v386 = vpop.f32.mrb[0].mxu0
    %387 = vdwg.mxu0
    %v389 = vsel %vm58, %v293, 0
    %v392 = vsel %vm298, %v56, 0
    %394 = vmatprep.subr.bf16.mxu0 0
    %395 = vmatpush1.bf16.msra.mxu0 %v392
    %396 = vmatprep.subr.bf16.mxu0 0
    %397 = vmatpush1.bf16.msra.mxu0 0
    %398 = vmatprep.subr.bf16.mxu0 0
    %399 = vmatpush1.bf16.msra.mxu0 0
    %400 = vmatprep.subr.bf16.mxu0 0
    %401 = vmatpush1.bf16.msra.mxu0 0
    %402 = vmatprep.subr.bf16.mxu0 0
    %403 = vmatpush1.bf16.msra.mxu0 0
    %404 = vmatprep.subr.bf16.mxu0 0
    %405 = vmatpush1.bf16.msra.mxu0 0
    %406 = vmatprep.subr.bf16.mxu0 0
    %407 = vmatpush1.bf16.msra.mxu0 0
    %408 = vmatprep.subr.bf16.mxu0 0
    %409 = vmatpush1.bf16.msra.mxu0 0
    %410 = vmatprep.subr.bf16.mxu0 0
    %411 = vmatpush1.bf16.msra.mxu0 0
    %412 = vmatprep.subr.bf16.mxu0 0
    %413 = vmatpush1.bf16.msra.mxu0 0
    %414 = vmatprep.subr.bf16.mxu0 0
    %415 = vmatpush1.bf16.msra.mxu0 0
    %416 = vmatprep.subr.bf16.mxu0 0
    %417 = vmatpush1.bf16.msra.mxu0 0
    %418 = vmatprep.subr.bf16.mxu0 0
    %419 = vmatpush1.bf16.msra.mxu0 0
    %420 = vmatprep.subr.bf16.mxu0 0
    %421 = vmatpush1.bf16.msra.mxu0 0
    %422 = vmatprep.subr.bf16.mxu0 0
    %423 = vmatpush1.bf16.msra.mxu0 0
    %424 = vmatprep.subr.bf16.mxu0 0
    %425 = vmatpush1.bf16.msra.mxu0 0
    %426 = vmatprep.mubr.bf16.mxu0 0
    %427 = vmatmul.mubr.bf16.gmra.mrb[0].mxu0 %v389
    %v428 = vpop.f32.mrb[0].mxu0
    %v429 = vadd.f32 0.0, %v428
    %v430 = vpop.f32.mrb[0].mxu0
    %v431 = vpop.f32.mrb[0].mxu0
    %v432 = vpop.f32.mrb[0].mxu0
    %433 = vdwg.mxu0
    %v435 = vsel %vm58, %v294, 0
    %v438 = vsel %vm298, %v57, 0
    %440 = vmatprep.subr.bf16.mxu0 0
    %441 = vmatpush1.bf16.msra.mxu0 %v438
    %442 = vmatprep.subr.bf16.mxu0 0
    %443 = vmatpush1.bf16.msra.mxu0 0
    %444 = vmatprep.subr.bf16.mxu0 0
    %445 = vmatpush1.bf16.msra.mxu0 0
    %446 = vmatprep.subr.bf16.mxu0 0
    %447 = vmatpush1.bf16.msra.mxu0 0
    %448 = vmatprep.subr.bf16.mxu0 0
    %449 = vmatpush1.bf16.msra.mxu0 0
    %450 = vmatprep.subr.bf16.mxu0 0
    %451 = vmatpush1.bf16.msra.mxu0 0
    %452 = vmatprep.subr.bf16.mxu0 0
    %453 = vmatpush1.bf16.msra.mxu0 0
    %454 = vmatprep.subr.bf16.mxu0 0
    %455 = vmatpush1.bf16.msra.mxu0 0
    %456 = vmatprep.subr.bf16.mxu0 0
    %457 = vmatpush1.bf16.msra.mxu0 0
    %458 = vmatprep.subr.bf16.mxu0 0
    %459 = vmatpush1.bf16.msra.mxu0 0
    %460 = vmatprep.subr.bf16.mxu0 0
    %461 = vmatpush1.bf16.msra.mxu0 0
    %462 = vmatprep.subr.bf16.mxu0 0
    %463 = vmatpush1.bf16.msra.mxu0 0
    %464 = vmatprep.subr.bf16.mxu0 0
    %465 = vmatpush1.bf16.msra.mxu0 0
    %466 = vmatprep.subr.bf16.mxu0 0
    %467 = vmatpush1.bf16.msra.mxu0 0
    %468 = vmatprep.subr.bf16.mxu0 0
    %469 = vmatpush1.bf16.msra.mxu0 0
    %470 = vmatprep.subr.bf16.mxu0 0
    %471 = vmatpush1.bf16.msra.mxu0 0
    %472 = vmatprep.mubr.bf16.mxu0 0
    %473 = vmatmul.mubr.bf16.gmra.mrb[0].mxu0 %v435
    %v474 = vpop.f32.mrb[0].mxu0
    %v475 = vadd.f32 0.0, %v474
    %v476 = vpop.f32.mrb[0].mxu0
    %v477 = vpop.f32.mrb[0].mxu0
    %v478 = vpop.f32.mrb[0].mxu0
    %479 = vdwg.mxu0
    %v480 = vpack.c.bf16 %v337, %v337
    %v481 = vpack.c.bf16 %v383, %v383
    %v482 = vpack.c.bf16 %v429, %v429
    %v483 = vpack.c.bf16 %v475, %v475
    %v484 = vld [vmem:[%s4] sm:$0xf]
    %v485 = vld [vmem:[%s4 + $0x4] sm:$0xf]
    %v486 = vld [vmem:[%s4 + $0x8] sm:$0xf]
    %v487 = vld [vmem:[%s4 + $0xc] sm:$0xf]
    %v489 = vsel %vm58, %v480, 0
    %v492 = vsel %vm298, %v484, 0
    %494 = vmatprep.subr.bf16.mxu0 0
    %495 = vmatpush1.bf16.msra.mxu0 %v492
    %496 = vmatprep.subr.bf16.mxu0 0
    %497 = vmatpush1.bf16.msra.mxu0 0
    %498 = vmatprep.subr.bf16.mxu0 0
    %499 = vmatpush1.bf16.msra.mxu0 0
    %500 = vmatprep.subr.bf16.mxu0 0
    %501 = vmatpush1.bf16.msra.mxu0 0
    %502 = vmatprep.subr.bf16.mxu0 0
    %503 = vmatpush1.bf16.msra.mxu0 0
    %504 = vmatprep.subr.bf16.mxu0 0
    %505 = vmatpush1.bf16.msra.mxu0 0
    %506 = vmatprep.subr.bf16.mxu0 0
    %507 = vmatpush1.bf16.msra.mxu0 0
    %508 = vmatprep.subr.bf16.mxu0 0
    %509 = vmatpush1.bf16.msra.mxu0 0
    %510 = vmatprep.subr.bf16.mxu0 0
    %511 = vmatpush1.bf16.msra.mxu0 0
    %512 = vmatprep.subr.bf16.mxu0 0
    %513 = vmatpush1.bf16.msra.mxu0 0
    %514 = vmatprep.subr.bf16.mxu0 0
    %515 = vmatpush1.bf16.msra.mxu0 0
    %516 = vmatprep.subr.bf16.mxu0 0
    %517 = vmatpush1.bf16.msra.mxu0 0
    %518 = vmatprep.subr.bf16.mxu0 0
    %519 = vmatpush1.bf16.msra.mxu0 0
    %520 = vmatprep.subr.bf16.mxu0 0
    %521 = vmatpush1.bf16.msra.mxu0 0
    %522 = vmatprep.subr.bf16.mxu0 0
    %523 = vmatpush1.bf16.msra.mxu0 0
    %524 = vmatprep.subr.bf16.mxu0 0
    %525 = vmatpush1.bf16.msra.mxu0 0
    %526 = vmatprep.mubr.bf16.mxu0 0
    %527 = vmatmul.mubr.bf16.gmra.mrb[0].mxu0 %v489
    %v528 = vpop.f32.mrb[0].mxu0
    %v529 = vadd.f32 0.0, %v528
    %v530 = vpop.f32.mrb[0].mxu0
    %v531 = vpop.f32.mrb[0].mxu0
    %v532 = vpop.f32.mrb[0].mxu0
    %533 = vdwg.mxu0
    %v535 = vsel %vm58, %v481, 0
    %v538 = vsel %vm298, %v485, 0
    %540 = vmatprep.subr.bf16.mxu0 0
    %541 = vmatpush1.bf16.msra.mxu0 %v538
    %542 = vmatprep.subr.bf16.mxu0 0
    %543 = vmatpush1.bf16.msra.mxu0 0
    %544 = vmatprep.subr.bf16.mxu0 0
    %545 = vmatpush1.bf16.msra.mxu0 0
    %546 = vmatprep.subr.bf16.mxu0 0
    %547 = vmatpush1.bf16.msra.mxu0 0
    %548 = vmatprep.subr.bf16.mxu0 0
    %549 = vmatpush1.bf16.msra.mxu0 0
    %550 = vmatprep.subr.bf16.mxu0 0
    %551 = vmatpush1.bf16.msra.mxu0 0
    %552 = vmatprep.subr.bf16.mxu0 0
    %553 = vmatpush1.bf16.msra.mxu0 0
    %554 = vmatprep.subr.bf16.mxu0 0
    %555 = vmatpush1.bf16.msra.mxu0 0
    %556 = vmatprep.subr.bf16.mxu0 0
    %557 = vmatpush1.bf16.msra.mxu0 0
    %558 = vmatprep.subr.bf16.mxu0 0
    %559 = vmatpush1.bf16.msra.mxu0 0
    %560 = vmatprep.subr.bf16.mxu0 0
    %561 = vmatpush1.bf16.msra.mxu0 0
    %562 = vmatprep.subr.bf16.mxu0 0
    %563 = vmatpush1.bf16.msra.mxu0 0
    %564 = vmatprep.subr.bf16.mxu0 0
    %565 = vmatpush1.bf16.msra.mxu0 0
    %566 = vmatprep.subr.bf16.mxu0 0
    %567 = vmatpush1.bf16.msra.mxu0 0
    %568 = vmatprep.subr.bf16.mxu0 0
    %569 = vmatpush1.bf16.msra.mxu0 0
    %570 = vmatprep.subr.bf16.mxu0 0
    %571 = vmatpush1.bf16.msra.mxu0 0
    %572 = vmatprep.mubr.bf16.mxu0 0
    %573 = vmatmul.mubr.bf16.gmra.mrb[0].mxu0 %v535
    %v574 = vpop.f32.mrb[0].mxu0
    %v575 = vadd.f32 0.0, %v574
    %v576 = vpop.f32.mrb[0].mxu0
    %v577 = vpop.f32.mrb[0].mxu0
    %v578 = vpop.f32.mrb[0].mxu0
    %579 = vdwg.mxu0
    %v581 = vsel %vm58, %v482, 0
    %v584 = vsel %vm298, %v486, 0
    %586 = vmatprep.subr.bf16.mxu0 0
    %587 = vmatpush1.bf16.msra.mxu0 %v584
    %588 = vmatprep.subr.bf16.mxu0 0
    %589 = vmatpush1.bf16.msra.mxu0 0
    %590 = vmatprep.subr.bf16.mxu0 0
    %591 = vmatpush1.bf16.msra.mxu0 0
    %592 = vmatprep.subr.bf16.mxu0 0
    %593 = vmatpush1.bf16.msra.mxu0 0
    %594 = vmatprep.subr.bf16.mxu0 0
    %595 = vmatpush1.bf16.msra.mxu0 0
    %596 = vmatprep.subr.bf16.mxu0 0
    %597 = vmatpush1.bf16.msra.mxu0 0
    %598 = vmatprep.subr.bf16.mxu0 0
    %599 = vmatpush1.bf16.msra.mxu0 0
    %600 = vmatprep.subr.bf16.mxu0 0
    %601 = vmatpush1.bf16.msra.mxu0 0
    %602 = vmatprep.subr.bf16.mxu0 0
    %603 = vmatpush1.bf16.msra.mxu0 0
    %604 = vmatprep.subr.bf16.mxu0 0
    %605 = vmatpush1.bf16.msra.mxu0 0
    %606 = vmatprep.subr.bf16.mxu0 0
    %607 = vmatpush1.bf16.msra.mxu0 0
    %608 = vmatprep.subr.bf16.mxu0 0
    %609 = vmatpush1.bf16.msra.mxu0 0
    %610 = vmatprep.subr.bf16.mxu0 0
    %611 = vmatpush1.bf16.msra.mxu0 0
    %612 = vmatprep.subr.bf16.mxu0 0
    %613 = vmatpush1.bf16.msra.mxu0 0
    %614 = vmatprep.subr.bf16.mxu0 0
    %615 = vmatpush1.bf16.msra.mxu0 0
    %616 = vmatprep.subr.bf16.mxu0 0
    %617 = vmatpush1.bf16.msra.mxu0 0
    %618 = vmatprep.mubr.bf16.mxu0 0
    %619 = vmatmul.mubr.bf16.gmra.mrb[0].mxu0 %v581
    %v620 = vpop.f32.mrb[0].mxu0
    %v621 = vadd.f32 0.0, %v620
    %v622 = vpop.f32.mrb[0].mxu0
    %v623 = vpop.f32.mrb[0].mxu0
    %v624 = vpop.f32.mrb[0].mxu0
    %625 = vdwg.mxu0
    %v627 = vsel %vm58, %v483, 0
    %v630 = vsel %vm298, %v487, 0
    %632 = vmatprep.subr.bf16.mxu0 0
    %633 = vmatpush1.bf16.msra.mxu0 %v630
    %634 = vmatprep.subr.bf16.mxu0 0
    %635 = vmatpush1.bf16.msra.mxu0 0
    %636 = vmatprep.subr.bf16.mxu0 0
    %637 = vmatpush1.bf16.msra.mxu0 0
    %638 = vmatprep.subr.bf16.mxu0 0
    %639 = vmatpush1.bf16.msra.mxu0 0
    %640 = vmatprep.subr.bf16.mxu0 0
    %641 = vmatpush1.bf16.msra.mxu0 0
    %642 = vmatprep.subr.bf16.mxu0 0
    %643 = vmatpush1.bf16.msra.mxu0 0
    %644 = vmatprep.subr.bf16.mxu0 0
    %645 = vmatpush1.bf16.msra.mxu0 0
    %646 = vmatprep.subr.bf16.mxu0 0
    %647 = vmatpush1.bf16.msra.mxu0 0
    %648 = vmatprep.subr.bf16.mxu0 0
    %649 = vmatpush1.bf16.msra.mxu0 0
    %650 = vmatprep.subr.bf16.mxu0 0
    %651 = vmatpush1.bf16.msra.mxu0 0
    %652 = vmatprep.subr.bf16.mxu0 0
    %653 = vmatpush1.bf16.msra.mxu0 0
    %654 = vmatprep.subr.bf16.mxu0 0
    %655 = vmatpush1.bf16.msra.mxu0 0
    %656 = vmatprep.subr.bf16.mxu0 0
    %657 = vmatpush1.bf16.msra.mxu0 0
    %658 = vmatprep.subr.bf16.mxu0 0
    %659 = vmatpush1.bf16.msra.mxu0 0
    %660 = vmatprep.subr.bf16.mxu0 0
    %661 = vmatpush1.bf16.msra.mxu0 0
    %662 = vmatprep.subr.bf16.mxu0 0
    %663 = vmatpush1.bf16.msra.mxu0 0
    %664 = vmatprep.mubr.bf16.mxu0 0
    %665 = vmatmul.mubr.bf16.gmra.mrb[0].mxu0 %v627
    %v666 = vpop.f32.mrb[0].mxu0
    %v667 = vadd.f32 0.0, %v666
    %v668 = vpop.f32.mrb[0].mxu0
    %v669 = vpop.f32.mrb[0].mxu0
    %v670 = vpop.f32.mrb[0].mxu0
    %671 = vdwg.mxu0
    %vm672 = vcmask 261120
    %v673 = vsel %vm672, %v529, 0.0
    %v674 = vsel %vm672, %v575, 0.0
    %v675 = vadd.f32 %v673, %v674
    %v676 = vsel %vm672, %v621, 0.0
    %v677 = vadd.f32 %v675, %v676
    %v678 = vsel %vm672, %v667, 0.0
    %v679 = vadd.f32 %v677, %v678
    %v680 = vld [vmem:[%s5] sm:$0x1]
    %v682 = vlaneseq
    %v683 = vshrl.u32 %v682, 7
    %v684 = vsub.s32 0, %v683
    %v685 = vrot.slane %v680, %v684
    %v687 = vadd.f32 %v679, %v685
    %v688 = vld [vmem:[%s3] sm:$0xff]
    %v689 = vadd.f32 %v687, %v688
    %v690 = vsel %vm672, %v689, 0.0
    %691 = vadd.xlane.f32.xlu0 %v690
    %v692 = vpop.xlane.xlu0 %691
    %v693 = vrcp.pop 32.0
    %v694 = vmul.f32 %v692, %v693
    %v695 = vsub.f32 %v689, %v694
    %v696 = vmul.f32 %v695, %v695
    %v697 = vsel %vm672, %v696, 0.0
    %698 = vadd.xlane.f32.xlu0 %v697
    %v699 = vpop.xlane.xlu0 %698
    %v700 = vmul.f32 %v699, %v693
    %v701 = vadd.f32 %v700, 1e-05
    %v702 = vrsqrt.pop %v701
    %v703 = vmul.f32 %v695, %v702
    %v704 = vld [vmem:[%s6] sm:$0x1]
    %v706 = vlaneseq
    %v707 = vshrl.u32 %v706, 7
    %v708 = vsub.s32 0, %v707
    %v709 = vrot.slane %v704, %v708
    %v711 = vmul.f32 %v703, %v709
    %v712 = vld [vmem:[%s7] sm:$0x1]
    %v714 = vlaneseq
    %v715 = vshrl.u32 %v714, 7
    %v716 = vsub.s32 0, %v715
    %v717 = vrot.slane %v712, %v716
    %v719 = vadd.f32 %v711, %v717
    %720 = vst.msk [vmem:[#allocation2] sm:$0xff] %vm672, %v719
    // Predicated region
    $region34: #{multi_head_attention.3} parent=1 // pred_check
      _
    $region35: #{multi_head_attention.3} parent=1 // pred_check_branch
      %722 = sbr.rel (0) target = $region37
    $region36: #{multi_head_attention.3} parent=1 // pred_region
      %s724 = ssub.s32 128, 128
      %725 = vsyncadd [#allocation3], %s724
      %s727 = sshll.u32 [#allocation2], 4
      %s728 = int_to_ptr.vmem [resolvable:$true] %s727
      %730 = dma.vmem_to_hbm [thread:$0]  %s728, 128, %s8, [#allocation3]
    $region37: #{multi_head_attention.3} parent=1 // pred_fallthru
      _
    // Predicated region
    $region38: #{multi_head_attention.3} parent=1 // pred_check
      _
    $region39: #{multi_head_attention.3} parent=1 // pred_check_branch
      %732 = sbr.rel (0) target = $region41
    $region40: #{multi_head_attention.3} parent=1 // pred_region
      %s734 = ssub.s32 512, 512
      %735 = vsyncadd [#allocation5], %s734
      %s736 = sshll.u32 [#allocation4], 4
      %s737 = int_to_ptr.vmem [resolvable:$true] %s736
      %742 = dma.vmem_to_hbm [thread:$0]  %s737, 512, %s9, [#allocation5], 128, 128, 8
    $region41: #{multi_head_attention.3} parent=1 // pred_fallthru
      _
    // Predicated region
    $region42: #{multi_head_attention.3} parent=1 // pred_check
      _
    $region43: #{multi_head_attention.3} parent=1 // pred_check_branch
      %744 = sbr.rel (0) target = $region45
    $region44: #{multi_head_attention.3} parent=1 // pred_region
      %745 = dma.done [#allocation3], 128
    $region45: #{multi_head_attention.3} parent=1 // pred_fallthru
      _
    // Predicated region
    $region46: #{multi_head_attention.3} parent=1 // pred_check
      _
    $region47: #{multi_head_attention.3} parent=1 // pred_check_branch
      %747 = sbr.rel (0) target = $region49
    $region48: #{multi_head_attention.3} parent=1 // pred_region
      %748 = dma.done [#allocation5], 512
    $region49: #{multi_head_attention.3} parent=1 // pred_fallthru
      _
    %749 = vsyncpa [#allocation3], 1
    %750 = vsyncpa [#allocation5], 1

</llo_original>
